<compile_context>
chip_gen: v7x
topology: tpu7x:2x2x1
jax: 0.10.0
libtpu: 0.0.40
codegen_flags: <defaults>
</compile_context>

<pallas_src>
import jax
import jax.numpy as jnp
from jax import lax
from jax.experimental import pallas as pl
from jax.experimental.pallas import tpu as pltpu

HIDDEN = 80      # real hidden width of Linear(1, 80)
LANES = 128      # TPU lane width; batch elements map onto lanes
ROW_BLOCK = 256  # max sublane-rows of batch per grid step (per-step VMEM ~0.5 MiB)
SUB_ROWS = 32    # rows per register-resident sub-tile (4 vregs y + 4 vregs acc)


def _cdiv(a, b):
    return -(-a // b)


def odefunc_kernel(w1_ref, b1_ref, w2_ref, b2_ref, y_ref, o_ref):
    """o = sum_j tanh(y*w1[j] + b1[j]) * w2[j] + b2 on one lane-dense slab.

    w1/b1/w2: (HIDDEN,) f32 in SMEM, b2: (1,) f32 in SMEM.
    y/o: (block_rows, 128) f32 in VMEM (batch elements, lane-dense).
    """
    block_rows = y_ref.shape[0]          # static, multiple of 8

    def compute_subtile(y_sub):
        # acc and y_sub stay in vregs for all 80 iterations; bias folded into init.
        acc0 = jnp.full(y_sub.shape, b2_ref[0], jnp.float32)

        def body(j, acc):
            h = jnp.tanh(y_sub * w1_ref[j] + b1_ref[j])   # VPU mul/add + EUP tanh
            return acc + h * w2_ref[j]                     # VPU accumulate

        return lax.fori_loop(0, HIDDEN, body, acc0, unroll=True)

    n_full = block_rows // SUB_ROWS
    rem = block_rows - n_full * SUB_ROWS  # multiple of 8 (possibly 0)

    if n_full > 0:
        @pl.loop(0, n_full)
        def _(i):
            r = pl.multiple_of(i * SUB_ROWS, SUB_ROWS)
            y_sub = y_ref[pl.ds(r, SUB_ROWS), :]
            o_ref[pl.ds(r, SUB_ROWS), :] = compute_subtile(y_sub)

    if rem > 0:
        r0 = n_full * SUB_ROWS            # static
        y_sub = y_ref[pl.ds(r0, rem), :]
        o_ref[pl.ds(r0, rem), :] = compute_subtile(y_sub)


def ode_func_forward(t, y, params):
    """Pallas equivalent of ODEFunc.forward(t, y) = net(y). y: (B, 1) float32."""
    del t  # the reference module ignores t
    w1, b1, w2, b2 = params               # (80,), (80,), (80,), (1,) float32
    B = y.shape[0]

    rows = _cdiv(B, LANES)
    rows8 = _cdiv(rows, 8) * 8             # pad to one sublane only

    # Equalized row blocks; >= 2 blocks when there is enough work (v7x megacore).
    if rows8 >= 16:
        num_blocks = max(2, _cdiv(rows8, ROW_BLOCK))
    else:
        num_blocks = 1
    block_rows = _cdiv(rows8 // 8, num_blocks) * 8
    rows_padded = num_blocks * block_rows

    n_padded = rows_padded * LANES
    y_flat = y.reshape(-1)
    if n_padded != B:
        y_flat = jnp.pad(y_flat, (0, n_padded - B))  # tail lanes zero (discarded)
    y2d = y_flat.reshape(rows_padded, LANES)          # lane-dense batch slab

    smem_spec = pl.BlockSpec(memory_space=pltpu.MemorySpace.SMEM)

    out2d = pl.pallas_call(
        odefunc_kernel,
        out_shape=jax.ShapeDtypeStruct((rows_padded, LANES), jnp.float32),
        grid=(num_blocks,),
        in_specs=[
            smem_spec,  # w1
            smem_spec,  # b1
            smem_spec,  # w2
            smem_spec,  # b2
            pl.BlockSpec((block_rows, LANES), lambda i: (i, 0)),  # y slab
        ],
        out_specs=pl.BlockSpec((block_rows, LANES), lambda i: (i, 0)),
        compiler_params=pltpu.CompilerParams(
            dimension_semantics=("parallel",),   # shard batch blocks across TCs
        ),
    )(w1, b1, w2, b2, y2d)

    return out2d.reshape(-1)[:B].reshape(B, 1)


# TODO(synk): for actual ODE integration, fuse all RK stages / a chunk of
# fixed-size solver steps into one pallas_call with an in-kernel loop so the
# ~0.35 us/step + host dispatch overhead stops dominating at small B.


def init_params(key):
    """Mirror the PyTorch init: weights ~ N(0, 0.1), biases = 0."""
    k1, k2 = jax.random.split(key)
    w1 = 0.1 * jax.random.normal(k1, (HIDDEN,), dtype=jnp.float32)  # Linear(1,80).weight[:, 0]
    b1 = jnp.zeros((HIDDEN,), jnp.float32)                          # Linear(1,80).bias
    w2 = 0.1 * jax.random.normal(k2, (HIDDEN,), dtype=jnp.float32)  # Linear(80,1).weight[0, :]
    b2 = jnp.zeros((1,), jnp.float32)                               # Linear(80,1).bias
    return w1, b1, w2, b2


def reference_forward(y, params):
    w1, b1, w2, b2 = params
    h = jnp.tanh(y * w1[None, :] + b1[None, :])                     # (B, 80)
    return jnp.sum(h * w2[None, :], axis=-1, keepdims=True) + b2[None, :]


if __name__ == "__main__":
    key = jax.random.PRNGKey(0)
    kp, ky = jax.random.split(key)
    params = init_params(kp)
    t = jnp.float32(0.0)  # unused; kept for signature parity with the module

    # Small shapes that still exercise all code paths:
    #   7    -> 1 block of 8 rows, remainder-only sub-tile
    #   300  -> 1 block of 8 rows (padding tail)
    #   8192 -> 2 equalized blocks of 32 rows, full 32-row sub-tile path
    for batch in (7, 300, 8192):
        yb = jax.random.normal(jax.random.fold_in(ky, batch), (batch, 1),
                               dtype=jnp.float32)
        out = jax.block_until_ready(ode_func_forward(t, yb, params))
        ref = reference_forward(yb, params)
        assert out.shape == (batch, 1) and out.dtype == jnp.float32
        assert jnp.allclose(out, ref, atol=2e-5, rtol=1e-5), (
            batch, float(jnp.max(jnp.abs(out - ref))))

    print("KERNEL_OK")
</pallas_src>

<mosaic_0001>
module attributes {stable_mosaic.version = 11 : i64} {
  func.func @odefunc_kernel(%arg0: i32, %arg1: memref<80xf32, #tpu.memory_space<smem>>, %arg2: memref<80xf32, #tpu.memory_space<smem>>, %arg3: memref<80xf32, #tpu.memory_space<smem>>, %arg4: memref<1xf32, #tpu.memory_space<smem>>, %arg5: memref<8x128xf32, #tpu.memory_space<vmem>>, %arg6: memref<8x128xf32, #tpu.memory_space<vmem>>) attributes {dimension_semantics = [#tpu.dimension_semantics<parallel>], iteration_bounds = array<i64: 1>, scalar_prefetch = 0 : i64, scratch_operands = 0 : i64, tpu.core_type = #tpu.core_type<tc>, window_params = [{transform_indices = @transform_0, window_bounds = array<i64: 80>}, {transform_indices = @transform_1, window_bounds = array<i64: 80>}, {transform_indices = @transform_2, window_bounds = array<i64: 80>}, {transform_indices = @transform_3, window_bounds = array<i64: 1>}, {transform_indices = @transform_4, window_bounds = array<i64: 8, 128>}, {transform_indices = @transform_5, window_bounds = array<i64: 8, 128>}]} {
    %c0 = arith.constant 0 : index
    %c0_0 = arith.constant 0 : index
    %0 = vector.load %arg5[%c0, %c0_0] : memref<8x128xf32, #tpu.memory_space<vmem>>, vector<8x128xf32>
    %c0_1 = arith.constant 0 : index
    %1 = memref.load %arg4[%c0_1] : memref<1xf32, #tpu.memory_space<smem>>
    %2 = vector.broadcast %1 : f32 to vector<8x128xf32>
    %c0_i32 = arith.constant 0 : i32
    %3 = arith.index_cast %c0_i32 : i32 to index
    %4 = memref.load %arg1[%3] : memref<80xf32, #tpu.memory_space<smem>>
    %5 = vector.broadcast %4 : f32 to vector<8x128xf32>
    %6 = arith.mulf %0, %5 : vector<8x128xf32>
    %7 = arith.index_cast %c0_i32 : i32 to index
    %8 = memref.load %arg2[%7] : memref<80xf32, #tpu.memory_space<smem>>
    %9 = vector.broadcast %8 : f32 to vector<8x128xf32>
    %10 = arith.addf %6, %9 : vector<8x128xf32>
    %11 = math.tanh %10 : vector<8x128xf32>
    %12 = arith.index_cast %c0_i32 : i32 to index
    %13 = memref.load %arg3[%12] : memref<80xf32, #tpu.memory_space<smem>>
    %14 = vector.broadcast %13 : f32 to vector<8x128xf32>
    %15 = arith.mulf %11, %14 : vector<8x128xf32>
    %16 = arith.addf %2, %15 : vector<8x128xf32>
    %c1_i32 = arith.constant 1 : i32
    %17 = arith.index_cast %c1_i32 : i32 to index
    %18 = memref.load %arg1[%17] : memref<80xf32, #tpu.memory_space<smem>>
    %19 = vector.broadcast %18 : f32 to vector<8x128xf32>
    %20 = arith.mulf %0, %19 : vector<8x128xf32>
    %21 = arith.index_cast %c1_i32 : i32 to index
    %22 = memref.load %arg2[%21] : memref<80xf32, #tpu.memory_space<smem>>
    %23 = vector.broadcast %22 : f32 to vector<8x128xf32>
    %24 = arith.addf %20, %23 : vector<8x128xf32>
    %25 = math.tanh %24 : vector<8x128xf32>
    %26 = arith.index_cast %c1_i32 : i32 to index
    %27 = memref.load %arg3[%26] : memref<80xf32, #tpu.memory_space<smem>>
    %28 = vector.broadcast %27 : f32 to vector<8x128xf32>
    %29 = arith.mulf %25, %28 : vector<8x128xf32>
    %30 = arith.addf %16, %29 : vector<8x128xf32>
    %c2_i32 = arith.constant 2 : i32
    %31 = arith.index_cast %c2_i32 : i32 to index
    %32 = memref.load %arg1[%31] : memref<80xf32, #tpu.memory_space<smem>>
    %33 = vector.broadcast %32 : f32 to vector<8x128xf32>
    %34 = arith.mulf %0, %33 : vector<8x128xf32>
    %35 = arith.index_cast %c2_i32 : i32 to index
    %36 = memref.load %arg2[%35] : memref<80xf32, #tpu.memory_space<smem>>
    %37 = vector.broadcast %36 : f32 to vector<8x128xf32>
    %38 = arith.addf %34, %37 : vector<8x128xf32>
    %39 = math.tanh %38 : vector<8x128xf32>
    %40 = arith.index_cast %c2_i32 : i32 to index
    %41 = memref.load %arg3[%40] : memref<80xf32, #tpu.memory_space<smem>>
    %42 = vector.broadcast %41 : f32 to vector<8x128xf32>
    %43 = arith.mulf %39, %42 : vector<8x128xf32>
    %44 = arith.addf %30, %43 : vector<8x128xf32>
    %c3_i32 = arith.constant 3 : i32
    %45 = arith.index_cast %c3_i32 : i32 to index
    %46 = memref.load %arg1[%45] : memref<80xf32, #tpu.memory_space<smem>>
    %47 = vector.broadcast %46 : f32 to vector<8x128xf32>
    %48 = arith.mulf %0, %47 : vector<8x128xf32>
    %49 = arith.index_cast %c3_i32 : i32 to index
    %50 = memref.load %arg2[%49] : memref<80xf32, #tpu.memory_space<smem>>
    %51 = vector.broadcast %50 : f32 to vector<8x128xf32>
    %52 = arith.addf %48, %51 : vector<8x128xf32>
    %53 = math.tanh %52 : vector<8x128xf32>
    %54 = arith.index_cast %c3_i32 : i32 to index
    %55 = memref.load %arg3[%54] : memref<80xf32, #tpu.memory_space<smem>>
    %56 = vector.broadcast %55 : f32 to vector<8x128xf32>
    %57 = arith.mulf %53, %56 : vector<8x128xf32>
    %58 = arith.addf %44, %57 : vector<8x128xf32>
    %c4_i32 = arith.constant 4 : i32
    %59 = arith.index_cast %c4_i32 : i32 to index
    %60 = memref.load %arg1[%59] : memref<80xf32, #tpu.memory_space<smem>>
    %61 = vector.broadcast %60 : f32 to vector<8x128xf32>
    %62 = arith.mulf %0, %61 : vector<8x128xf32>
    %63 = arith.index_cast %c4_i32 : i32 to index
    %64 = memref.load %arg2[%63] : memref<80xf32, #tpu.memory_space<smem>>
    %65 = vector.broadcast %64 : f32 to vector<8x128xf32>
    %66 = arith.addf %62, %65 : vector<8x128xf32>
    %67 = math.tanh %66 : vector<8x128xf32>
    %68 = arith.index_cast %c4_i32 : i32 to index
    %69 = memref.load %arg3[%68] : memref<80xf32, #tpu.memory_space<smem>>
    %70 = vector.broadcast %69 : f32 to vector<8x128xf32>
    %71 = arith.mulf %67, %70 : vector<8x128xf32>
    %72 = arith.addf %58, %71 : vector<8x128xf32>
    %c5_i32 = arith.constant 5 : i32
    %73 = arith.index_cast %c5_i32 : i32 to index
    %74 = memref.load %arg1[%73] : memref<80xf32, #tpu.memory_space<smem>>
    %75 = vector.broadcast %74 : f32 to vector<8x128xf32>
    %76 = arith.mulf %0, %75 : vector<8x128xf32>
    %77 = arith.index_cast %c5_i32 : i32 to index
    %78 = memref.load %arg2[%77] : memref<80xf32, #tpu.memory_space<smem>>
    %79 = vector.broadcast %78 : f32 to vector<8x128xf32>
    %80 = arith.addf %76, %79 : vector<8x128xf32>
    %81 = math.tanh %80 : vector<8x128xf32>
    %82 = arith.index_cast %c5_i32 : i32 to index
    %83 = memref.load %arg3[%82] : memref<80xf32, #tpu.memory_space<smem>>
    %84 = vector.broadcast %83 : f32 to vector<8x128xf32>
    %85 = arith.mulf %81, %84 : vector<8x128xf32>
    %86 = arith.addf %72, %85 : vector<8x128xf32>
    %c6_i32 = arith.constant 6 : i32
    %87 = arith.index_cast %c6_i32 : i32 to index
    %88 = memref.load %arg1[%87] : memref<80xf32, #tpu.memory_space<smem>>
    %89 = vector.broadcast %88 : f32 to vector<8x128xf32>
    %90 = arith.mulf %0, %89 : vector<8x128xf32>
    %91 = arith.index_cast %c6_i32 : i32 to index
    %92 = memref.load %arg2[%91] : memref<80xf32, #tpu.memory_space<smem>>
    %93 = vector.broadcast %92 : f32 to vector<8x128xf32>
    %94 = arith.addf %90, %93 : vector<8x128xf32>
    %95 = math.tanh %94 : vector<8x128xf32>
    %96 = arith.index_cast %c6_i32 : i32 to index
    %97 = memref.load %arg3[%96] : memref<80xf32, #tpu.memory_space<smem>>
    %98 = vector.broadcast %97 : f32 to vector<8x128xf32>
    %99 = arith.mulf %95, %98 : vector<8x128xf32>
    %100 = arith.addf %86, %99 : vector<8x128xf32>
    %c7_i32 = arith.constant 7 : i32
    %101 = arith.index_cast %c7_i32 : i32 to index
    %102 = memref.load %arg1[%101] : memref<80xf32, #tpu.memory_space<smem>>
    %103 = vector.broadcast %102 : f32 to vector<8x128xf32>
    %104 = arith.mulf %0, %103 : vector<8x128xf32>
    %105 = arith.index_cast %c7_i32 : i32 to index
    %106 = memref.load %arg2[%105] : memref<80xf32, #tpu.memory_space<smem>>
    %107 = vector.broadcast %106 : f32 to vector<8x128xf32>
    %108 = arith.addf %104, %107 : vector<8x128xf32>
    %109 = math.tanh %108 : vector<8x128xf32>
    %110 = arith.index_cast %c7_i32 : i32 to index
    %111 = memref.load %arg3[%110] : memref<80xf32, #tpu.memory_space<smem>>
    %112 = vector.broadcast %111 : f32 to vector<8x128xf32>
    %113 = arith.mulf %109, %112 : vector<8x128xf32>
    %114 = arith.addf %100, %113 : vector<8x128xf32>
    %c8_i32 = arith.constant 8 : i32
    %115 = arith.index_cast %c8_i32 : i32 to index
    %116 = memref.load %arg1[%115] : memref<80xf32, #tpu.memory_space<smem>>
    %117 = vector.broadcast %116 : f32 to vector<8x128xf32>
    %118 = arith.mulf %0, %117 : vector<8x128xf32>
    %119 = arith.index_cast %c8_i32 : i32 to index
    %120 = memref.load %arg2[%119] : memref<80xf32, #tpu.memory_space<smem>>
    %121 = vector.broadcast %120 : f32 to vector<8x128xf32>
    %122 = arith.addf %118, %121 : vector<8x128xf32>
    %123 = math.tanh %122 : vector<8x128xf32>
    %124 = arith.index_cast %c8_i32 : i32 to index
    %125 = memref.load %arg3[%124] : memref<80xf32, #tpu.memory_space<smem>>
    %126 = vector.broadcast %125 : f32 to vector<8x128xf32>
    %127 = arith.mulf %123, %126 : vector<8x128xf32>
    %128 = arith.addf %114, %127 : vector<8x128xf32>
    %c9_i32 = arith.constant 9 : i32
    %129 = arith.index_cast %c9_i32 : i32 to index
    %130 = memref.load %arg1[%129] : memref<80xf32, #tpu.memory_space<smem>>
    %131 = vector.broadcast %130 : f32 to vector<8x128xf32>
    %132 = arith.mulf %0, %131 : vector<8x128xf32>
    %133 = arith.index_cast %c9_i32 : i32 to index
    %134 = memref.load %arg2[%133] : memref<80xf32, #tpu.memory_space<smem>>
    %135 = vector.broadcast %134 : f32 to vector<8x128xf32>
    %136 = arith.addf %132, %135 : vector<8x128xf32>
    %137 = math.tanh %136 : vector<8x128xf32>
    %138 = arith.index_cast %c9_i32 : i32 to index
    %139 = memref.load %arg3[%138] : memref<80xf32, #tpu.memory_space<smem>>
    %140 = vector.broadcast %139 : f32 to vector<8x128xf32>
    %141 = arith.mulf %137, %140 : vector<8x128xf32>
    %142 = arith.addf %128, %141 : vector<8x128xf32>
    %c10_i32 = arith.constant 10 : i32
    %143 = arith.index_cast %c10_i32 : i32 to index
    %144 = memref.load %arg1[%143] : memref<80xf32, #tpu.memory_space<smem>>
    %145 = vector.broadcast %144 : f32 to vector<8x128xf32>
    %146 = arith.mulf %0, %145 : vector<8x128xf32>
    %147 = arith.index_cast %c10_i32 : i32 to index
    %148 = memref.load %arg2[%147] : memref<80xf32, #tpu.memory_space<smem>>
    %149 = vector.broadcast %148 : f32 to vector<8x128xf32>
    %150 = arith.addf %146, %149 : vector<8x128xf32>
    %151 = math.tanh %150 : vector<8x128xf32>
    %152 = arith.index_cast %c10_i32 : i32 to index
    %153 = memref.load %arg3[%152] : memref<80xf32, #tpu.memory_space<smem>>
    %154 = vector.broadcast %153 : f32 to vector<8x128xf32>
    %155 = arith.mulf %151, %154 : vector<8x128xf32>
    %156 = arith.addf %142, %155 : vector<8x128xf32>
    %c11_i32 = arith.constant 11 : i32
    %157 = arith.index_cast %c11_i32 : i32 to index
    %158 = memref.load %arg1[%157] : memref<80xf32, #tpu.memory_space<smem>>
    %159 = vector.broadcast %158 : f32 to vector<8x128xf32>
    %160 = arith.mulf %0, %159 : vector<8x128xf32>
    %161 = arith.index_cast %c11_i32 : i32 to index
    %162 = memref.load %arg2[%161] : memref<80xf32, #tpu.memory_space<smem>>
    %163 = vector.broadcast %162 : f32 to vector<8x128xf32>
    %164 = arith.addf %160, %163 : vector<8x128xf32>
    %165 = math.tanh %164 : vector<8x128xf32>
    %166 = arith.index_cast %c11_i32 : i32 to index
    %167 = memref.load %arg3[%166] : memref<80xf32, #tpu.memory_space<smem>>
    %168 = vector.broadcast %167 : f32 to vector<8x128xf32>
    %169 = arith.mulf %165, %168 : vector<8x128xf32>
    %170 = arith.addf %156, %169 : vector<8x128xf32>
    %c12_i32 = arith.constant 12 : i32
    %171 = arith.index_cast %c12_i32 : i32 to index
    %172 = memref.load %arg1[%171] : memref<80xf32, #tpu.memory_space<smem>>
    %173 = vector.broadcast %172 : f32 to vector<8x128xf32>
    %174 = arith.mulf %0, %173 : vector<8x128xf32>
    %175 = arith.index_cast %c12_i32 : i32 to index
    %176 = memref.load %arg2[%175] : memref<80xf32, #tpu.memory_space<smem>>
    %177 = vector.broadcast %176 : f32 to vector<8x128xf32>
    %178 = arith.addf %174, %177 : vector<8x128xf32>
    %179 = math.tanh %178 : vector<8x128xf32>
    %180 = arith.index_cast %c12_i32 : i32 to index
    %181 = memref.load %arg3[%180] : memref<80xf32, #tpu.memory_space<smem>>
    %182 = vector.broadcast %181 : f32 to vector<8x128xf32>
    %183 = arith.mulf %179, %182 : vector<8x128xf32>
    %184 = arith.addf %170, %183 : vector<8x128xf32>
    %c13_i32 = arith.constant 13 : i32
    %185 = arith.index_cast %c13_i32 : i32 to index
    %186 = memref.load %arg1[%185] : memref<80xf32, #tpu.memory_space<smem>>
    %187 = vector.broadcast %186 : f32 to vector<8x128xf32>
    %188 = arith.mulf %0, %187 : vector<8x128xf32>
    %189 = arith.index_cast %c13_i32 : i32 to index
    %190 = memref.load %arg2[%189] : memref<80xf32, #tpu.memory_space<smem>>
    %191 = vector.broadcast %190 : f32 to vector<8x128xf32>
    %192 = arith.addf %188, %191 : vector<8x128xf32>
    %193 = math.tanh %192 : vector<8x128xf32>
    %194 = arith.index_cast %c13_i32 : i32 to index
    %195 = memref.load %arg3[%194] : memref<80xf32, #tpu.memory_space<smem>>
    %196 = vector.broadcast %195 : f32 to vector<8x128xf32>
    %197 = arith.mulf %193, %196 : vector<8x128xf32>
    %198 = arith.addf %184, %197 : vector<8x128xf32>
    %c14_i32 = arith.constant 14 : i32
    %199 = arith.index_cast %c14_i32 : i32 to index
    %200 = memref.load %arg1[%199] : memref<80xf32, #tpu.memory_space<smem>>
    %201 = vector.broadcast %200 : f32 to vector<8x128xf32>
    %202 = arith.mulf %0, %201 : vector<8x128xf32>
    %203 = arith.index_cast %c14_i32 : i32 to index
    %204 = memref.load %arg2[%203] : memref<80xf32, #tpu.memory_space<smem>>
    %205 = vector.broadcast %204 : f32 to vector<8x128xf32>
    %206 = arith.addf %202, %205 : vector<8x128xf32>
    %207 = math.tanh %206 : vector<8x128xf32>
    %208 = arith.index_cast %c14_i32 : i32 to index
    %209 = memref.load %arg3[%208] : memref<80xf32, #tpu.memory_space<smem>>
    %210 = vector.broadcast %209 : f32 to vector<8x128xf32>
    %211 = arith.mulf %207, %210 : vector<8x128xf32>
    %212 = arith.addf %198, %211 : vector<8x128xf32>
    %c15_i32 = arith.constant 15 : i32
    %213 = arith.index_cast %c15_i32 : i32 to index
    %214 = memref.load %arg1[%213] : memref<80xf32, #tpu.memory_space<smem>>
    %215 = vector.broadcast %214 : f32 to vector<8x128xf32>
    %216 = arith.mulf %0, %215 : vector<8x128xf32>
    %217 = arith.index_cast %c15_i32 : i32 to index
    %218 = memref.load %arg2[%217] : memref<80xf32, #tpu.memory_space<smem>>
    %219 = vector.broadcast %218 : f32 to vector<8x128xf32>
    %220 = arith.addf %216, %219 : vector<8x128xf32>
    %221 = math.tanh %220 : vector<8x128xf32>
    %222 = arith.index_cast %c15_i32 : i32 to index
    %223 = memref.load %arg3[%222] : memref<80xf32, #tpu.memory_space<smem>>
    %224 = vector.broadcast %223 : f32 to vector<8x128xf32>
    %225 = arith.mulf %221, %224 : vector<8x128xf32>
    %226 = arith.addf %212, %225 : vector<8x128xf32>
    %c16_i32 = arith.constant 16 : i32
    %227 = arith.index_cast %c16_i32 : i32 to index
    %228 = memref.load %arg1[%227] : memref<80xf32, #tpu.memory_space<smem>>
    %229 = vector.broadcast %228 : f32 to vector<8x128xf32>
    %230 = arith.mulf %0, %229 : vector<8x128xf32>
    %231 = arith.index_cast %c16_i32 : i32 to index
    %232 = memref.load %arg2[%231] : memref<80xf32, #tpu.memory_space<smem>>
    %233 = vector.broadcast %232 : f32 to vector<8x128xf32>
    %234 = arith.addf %230, %233 : vector<8x128xf32>
    %235 = math.tanh %234 : vector<8x128xf32>
    %236 = arith.index_cast %c16_i32 : i32 to index
    %237 = memref.load %arg3[%236] : memref<80xf32, #tpu.memory_space<smem>>
    %238 = vector.broadcast %237 : f32 to vector<8x128xf32>
    %239 = arith.mulf %235, %238 : vector<8x128xf32>
    %240 = arith.addf %226, %239 : vector<8x128xf32>
    %c17_i32 = arith.constant 17 : i32
    %241 = arith.index_cast %c17_i32 : i32 to index
    %242 = memref.load %arg1[%241] : memref<80xf32, #tpu.memory_space<smem>>
    %243 = vector.broadcast %242 : f32 to vector<8x128xf32>
    %244 = arith.mulf %0, %243 : vector<8x128xf32>
    %245 = arith.index_cast %c17_i32 : i32 to index
    %246 = memref.load %arg2[%245] : memref<80xf32, #tpu.memory_space<smem>>
    %247 = vector.broadcast %246 : f32 to vector<8x128xf32>
    %248 = arith.addf %244, %247 : vector<8x128xf32>
    %249 = math.tanh %248 : vector<8x128xf32>
    %250 = arith.index_cast %c17_i32 : i32 to index
    %251 = memref.load %arg3[%250] : memref<80xf32, #tpu.memory_space<smem>>
    %252 = vector.broadcast %251 : f32 to vector<8x128xf32>
    %253 = arith.mulf %249, %252 : vector<8x128xf32>
    %254 = arith.addf %240, %253 : vector<8x128xf32>
    %c18_i32 = arith.constant 18 : i32
    %255 = arith.index_cast %c18_i32 : i32 to index
    %256 = memref.load %arg1[%255] : memref<80xf32, #tpu.memory_space<smem>>
    %257 = vector.broadcast %256 : f32 to vector<8x128xf32>
    %258 = arith.mulf %0, %257 : vector<8x128xf32>
    %259 = arith.index_cast %c18_i32 : i32 to index
    %260 = memref.load %arg2[%259] : memref<80xf32, #tpu.memory_space<smem>>
    %261 = vector.broadcast %260 : f32 to vector<8x128xf32>
    %262 = arith.addf %258, %261 : vector<8x128xf32>
    %263 = math.tanh %262 : vector<8x128xf32>
    %264 = arith.index_cast %c18_i32 : i32 to index
    %265 = memref.load %arg3[%264] : memref<80xf32, #tpu.memory_space<smem>>
    %266 = vector.broadcast %265 : f32 to vector<8x128xf32>
    %267 = arith.mulf %263, %266 : vector<8x128xf32>
    %268 = arith.addf %254, %267 : vector<8x128xf32>
    %c19_i32 = arith.constant 19 : i32
    %269 = arith.index_cast %c19_i32 : i32 to index
    %270 = memref.load %arg1[%269] : memref<80xf32, #tpu.memory_space<smem>>
    %271 = vector.broadcast %270 : f32 to vector<8x128xf32>
    %272 = arith.mulf %0, %271 : vector<8x128xf32>
    %273 = arith.index_cast %c19_i32 : i32 to index
    %274 = memref.load %arg2[%273] : memref<80xf32, #tpu.memory_space<smem>>
    %275 = vector.broadcast %274 : f32 to vector<8x128xf32>
    %276 = arith.addf %272, %275 : vector<8x128xf32>
    %277 = math.tanh %276 : vector<8x128xf32>
    %278 = arith.index_cast %c19_i32 : i32 to index
    %279 = memref.load %arg3[%278] : memref<80xf32, #tpu.memory_space<smem>>
    %280 = vector.broadcast %279 : f32 to vector<8x128xf32>
    %281 = arith.mulf %277, %280 : vector<8x128xf32>
    %282 = arith.addf %268, %281 : vector<8x128xf32>
    %c20_i32 = arith.constant 20 : i32
    %283 = arith.index_cast %c20_i32 : i32 to index
    %284 = memref.load %arg1[%283] : memref<80xf32, #tpu.memory_space<smem>>
    %285 = vector.broadcast %284 : f32 to vector<8x128xf32>
    %286 = arith.mulf %0, %285 : vector<8x128xf32>
    %287 = arith.index_cast %c20_i32 : i32 to index
    %288 = memref.load %arg2[%287] : memref<80xf32, #tpu.memory_space<smem>>
    %289 = vector.broadcast %288 : f32 to vector<8x128xf32>
    %290 = arith.addf %286, %289 : vector<8x128xf32>
    %291 = math.tanh %290 : vector<8x128xf32>
    %292 = arith.index_cast %c20_i32 : i32 to index
    %293 = memref.load %arg3[%292] : memref<80xf32, #tpu.memory_space<smem>>
    %294 = vector.broadcast %293 : f32 to vector<8x128xf32>
    %295 = arith.mulf %291, %294 : vector<8x128xf32>
    %296 = arith.addf %282, %295 : vector<8x128xf32>
    %c21_i32 = arith.constant 21 : i32
    %297 = arith.index_cast %c21_i32 : i32 to index
    %298 = memref.load %arg1[%297] : memref<80xf32, #tpu.memory_space<smem>>
    %299 = vector.broadcast %298 : f32 to vector<8x128xf32>
    %300 = arith.mulf %0, %299 : vector<8x128xf32>
    %301 = arith.index_cast %c21_i32 : i32 to index
    %302 = memref.load %arg2[%301] : memref<80xf32, #tpu.memory_space<smem>>
    %303 = vector.broadcast %302 : f32 to vector<8x128xf32>
    %304 = arith.addf %300, %303 : vector<8x128xf32>
    %305 = math.tanh %304 : vector<8x128xf32>
    %306 = arith.index_cast %c21_i32 : i32 to index
    %307 = memref.load %arg3[%306] : memref<80xf32, #tpu.memory_space<smem>>
    %308 = vector.broadcast %307 : f32 to vector<8x128xf32>
    %309 = arith.mulf %305, %308 : vector<8x128xf32>
    %310 = arith.addf %296, %309 : vector<8x128xf32>
    %c22_i32 = arith.constant 22 : i32
    %311 = arith.index_cast %c22_i32 : i32 to index
    %312 = memref.load %arg1[%311] : memref<80xf32, #tpu.memory_space<smem>>
    %313 = vector.broadcast %312 : f32 to vector<8x128xf32>
    %314 = arith.mulf %0, %313 : vector<8x128xf32>
    %315 = arith.index_cast %c22_i32 : i32 to index
    %316 = memref.load %arg2[%315] : memref<80xf32, #tpu.memory_space<smem>>
    %317 = vector.broadcast %316 : f32 to vector<8x128xf32>
    %318 = arith.addf %314, %317 : vector<8x128xf32>
    %319 = math.tanh %318 : vector<8x128xf32>
    %320 = arith.index_cast %c22_i32 : i32 to index
    %321 = memref.load %arg3[%320] : memref<80xf32, #tpu.memory_space<smem>>
    %322 = vector.broadcast %321 : f32 to vector<8x128xf32>
    %323 = arith.mulf %319, %322 : vector<8x128xf32>
    %324 = arith.addf %310, %323 : vector<8x128xf32>
    %c23_i32 = arith.constant 23 : i32
    %325 = arith.index_cast %c23_i32 : i32 to index
    %326 = memref.load %arg1[%325] : memref<80xf32, #tpu.memory_space<smem>>
    %327 = vector.broadcast %326 : f32 to vector<8x128xf32>
    %328 = arith.mulf %0, %327 : vector<8x128xf32>
    %329 = arith.index_cast %c23_i32 : i32 to index
    %330 = memref.load %arg2[%329] : memref<80xf32, #tpu.memory_space<smem>>
    %331 = vector.broadcast %330 : f32 to vector<8x128xf32>
    %332 = arith.addf %328, %331 : vector<8x128xf32>
    %333 = math.tanh %332 : vector<8x128xf32>
    %334 = arith.index_cast %c23_i32 : i32 to index
    %335 = memref.load %arg3[%334] : memref<80xf32, #tpu.memory_space<smem>>
    %336 = vector.broadcast %335 : f32 to vector<8x128xf32>
    %337 = arith.mulf %333, %336 : vector<8x128xf32>
    %338 = arith.addf %324, %337 : vector<8x128xf32>
    %c24_i32 = arith.constant 24 : i32
    %339 = arith.index_cast %c24_i32 : i32 to index
    %340 = memref.load %arg1[%339] : memref<80xf32, #tpu.memory_space<smem>>
    %341 = vector.broadcast %340 : f32 to vector<8x128xf32>
    %342 = arith.mulf %0, %341 : vector<8x128xf32>
    %343 = arith.index_cast %c24_i32 : i32 to index
    %344 = memref.load %arg2[%343] : memref<80xf32, #tpu.memory_space<smem>>
    %345 = vector.broadcast %344 : f32 to vector<8x128xf32>
    %346 = arith.addf %342, %345 : vector<8x128xf32>
    %347 = math.tanh %346 : vector<8x128xf32>
    %348 = arith.index_cast %c24_i32 : i32 to index
    %349 = memref.load %arg3[%348] : memref<80xf32, #tpu.memory_space<smem>>
    %350 = vector.broadcast %349 : f32 to vector<8x128xf32>
    %351 = arith.mulf %347, %350 : vector<8x128xf32>
    %352 = arith.addf %338, %351 : vector<8x128xf32>
    %c25_i32 = arith.constant 25 : i32
    %353 = arith.index_cast %c25_i32 : i32 to index
    %354 = memref.load %arg1[%353] : memref<80xf32, #tpu.memory_space<smem>>
    %355 = vector.broadcast %354 : f32 to vector<8x128xf32>
    %356 = arith.mulf %0, %355 : vector<8x128xf32>
    %357 = arith.index_cast %c25_i32 : i32 to index
    %358 = memref.load %arg2[%357] : memref<80xf32, #tpu.memory_space<smem>>
    %359 = vector.broadcast %358 : f32 to vector<8x128xf32>
    %360 = arith.addf %356, %359 : vector<8x128xf32>
    %361 = math.tanh %360 : vector<8x128xf32>
    %362 = arith.index_cast %c25_i32 : i32 to index
    %363 = memref.load %arg3[%362] : memref<80xf32, #tpu.memory_space<smem>>
    %364 = vector.broadcast %363 : f32 to vector<8x128xf32>
    %365 = arith.mulf %361, %364 : vector<8x128xf32>
    %366 = arith.addf %352, %365 : vector<8x128xf32>
    %c26_i32 = arith.constant 26 : i32
    %367 = arith.index_cast %c26_i32 : i32 to index
    %368 = memref.load %arg1[%367] : memref<80xf32, #tpu.memory_space<smem>>
    %369 = vector.broadcast %368 : f32 to vector<8x128xf32>
    %370 = arith.mulf %0, %369 : vector<8x128xf32>
    %371 = arith.index_cast %c26_i32 : i32 to index
    %372 = memref.load %arg2[%371] : memref<80xf32, #tpu.memory_space<smem>>
    %373 = vector.broadcast %372 : f32 to vector<8x128xf32>
    %374 = arith.addf %370, %373 : vector<8x128xf32>
    %375 = math.tanh %374 : vector<8x128xf32>
    %376 = arith.index_cast %c26_i32 : i32 to index
    %377 = memref.load %arg3[%376] : memref<80xf32, #tpu.memory_space<smem>>
    %378 = vector.broadcast %377 : f32 to vector<8x128xf32>
    %379 = arith.mulf %375, %378 : vector<8x128xf32>
    %380 = arith.addf %366, %379 : vector<8x128xf32>
    %c27_i32 = arith.constant 27 : i32
    %381 = arith.index_cast %c27_i32 : i32 to index
    %382 = memref.load %arg1[%381] : memref<80xf32, #tpu.memory_space<smem>>
    %383 = vector.broadcast %382 : f32 to vector<8x128xf32>
    %384 = arith.mulf %0, %383 : vector<8x128xf32>
    %385 = arith.index_cast %c27_i32 : i32 to index
    %386 = memref.load %arg2[%385] : memref<80xf32, #tpu.memory_space<smem>>
    %387 = vector.broadcast %386 : f32 to vector<8x128xf32>
    %388 = arith.addf %384, %387 : vector<8x128xf32>
    %389 = math.tanh %388 : vector<8x128xf32>
    %390 = arith.index_cast %c27_i32 : i32 to index
    %391 = memref.load %arg3[%390] : memref<80xf32, #tpu.memory_space<smem>>
    %392 = vector.broadcast %391 : f32 to vector<8x128xf32>
    %393 = arith.mulf %389, %392 : vector<8x128xf32>
    %394 = arith.addf %380, %393 : vector<8x128xf32>
    %c28_i32 = arith.constant 28 : i32
    %395 = arith.index_cast %c28_i32 : i32 to index
    %396 = memref.load %arg1[%395] : memref<80xf32, #tpu.memory_space<smem>>
    %397 = vector.broadcast %396 : f32 to vector<8x128xf32>
    %398 = arith.mulf %0, %397 : vector<8x128xf32>
    %399 = arith.index_cast %c28_i32 : i32 to index
    %400 = memref.load %arg2[%399] : memref<80xf32, #tpu.memory_space<smem>>
    %401 = vector.broadcast %400 : f32 to vector<8x128xf32>
    %402 = arith.addf %398, %401 : vector<8x128xf32>
    %403 = math.tanh %402 : vector<8x128xf32>
    %404 = arith.index_cast %c28_i32 : i32 to index
    %405 = memref.load %arg3[%404] : memref<80xf32, #tpu.memory_space<smem>>
    %406 = vector.broadcast %405 : f32 to vector<8x128xf32>
    %407 = arith.mulf %403, %406 : vector<8x128xf32>
    %408 = arith.addf %394, %407 : vector<8x128xf32>
    %c29_i32 = arith.constant 29 : i32
    %409 = arith.index_cast %c29_i32 : i32 to index
    %410 = memref.load %arg1[%409] : memref<80xf32, #tpu.memory_space<smem>>
    %411 = vector.broadcast %410 : f32 to vector<8x128xf32>
    %412 = arith.mulf %0, %411 : vector<8x128xf32>
    %413 = arith.index_cast %c29_i32 : i32 to index
    %414 = memref.load %arg2[%413] : memref<80xf32, #tpu.memory_space<smem>>
    %415 = vector.broadcast %414 : f32 to vector<8x128xf32>
    %416 = arith.addf %412, %415 : vector<8x128xf32>
    %417 = math.tanh %416 : vector<8x128xf32>
    %418 = arith.index_cast %c29_i32 : i32 to index
    %419 = memref.load %arg3[%418] : memref<80xf32, #tpu.memory_space<smem>>
    %420 = vector.broadcast %419 : f32 to vector<8x128xf32>
    %421 = arith.mulf %417, %420 : vector<8x128xf32>
    %422 = arith.addf %408, %421 : vector<8x128xf32>
    %c30_i32 = arith.constant 30 : i32
    %423 = arith.index_cast %c30_i32 : i32 to index
    %424 = memref.load %arg1[%423] : memref<80xf32, #tpu.memory_space<smem>>
    %425 = vector.broadcast %424 : f32 to vector<8x128xf32>
    %426 = arith.mulf %0, %425 : vector<8x128xf32>
    %427 = arith.index_cast %c30_i32 : i32 to index
    %428 = memref.load %arg2[%427] : memref<80xf32, #tpu.memory_space<smem>>
    %429 = vector.broadcast %428 : f32 to vector<8x128xf32>
    %430 = arith.addf %426, %429 : vector<8x128xf32>
    %431 = math.tanh %430 : vector<8x128xf32>
    %432 = arith.index_cast %c30_i32 : i32 to index
    %433 = memref.load %arg3[%432] : memref<80xf32, #tpu.memory_space<smem>>
    %434 = vector.broadcast %433 : f32 to vector<8x128xf32>
    %435 = arith.mulf %431, %434 : vector<8x128xf32>
    %436 = arith.addf %422, %435 : vector<8x128xf32>
    %c31_i32 = arith.constant 31 : i32
    %437 = arith.index_cast %c31_i32 : i32 to index
    %438 = memref.load %arg1[%437] : memref<80xf32, #tpu.memory_space<smem>>
    %439 = vector.broadcast %438 : f32 to vector<8x128xf32>
    %440 = arith.mulf %0, %439 : vector<8x128xf32>
    %441 = arith.index_cast %c31_i32 : i32 to index
    %442 = memref.load %arg2[%441] : memref<80xf32, #tpu.memory_space<smem>>
    %443 = vector.broadcast %442 : f32 to vector<8x128xf32>
    %444 = arith.addf %440, %443 : vector<8x128xf32>
    %445 = math.tanh %444 : vector<8x128xf32>
    %446 = arith.index_cast %c31_i32 : i32 to index
    %447 = memref.load %arg3[%446] : memref<80xf32, #tpu.memory_space<smem>>
    %448 = vector.broadcast %447 : f32 to vector<8x128xf32>
    %449 = arith.mulf %445, %448 : vector<8x128xf32>
    %450 = arith.addf %436, %449 : vector<8x128xf32>
    %c32_i32 = arith.constant 32 : i32
    %451 = arith.index_cast %c32_i32 : i32 to index
    %452 = memref.load %arg1[%451] : memref<80xf32, #tpu.memory_space<smem>>
    %453 = vector.broadcast %452 : f32 to vector<8x128xf32>
    %454 = arith.mulf %0, %453 : vector<8x128xf32>
    %455 = arith.index_cast %c32_i32 : i32 to index
    %456 = memref.load %arg2[%455] : memref<80xf32, #tpu.memory_space<smem>>
    %457 = vector.broadcast %456 : f32 to vector<8x128xf32>
    %458 = arith.addf %454, %457 : vector<8x128xf32>
    %459 = math.tanh %458 : vector<8x128xf32>
    %460 = arith.index_cast %c32_i32 : i32 to index
    %461 = memref.load %arg3[%460] : memref<80xf32, #tpu.memory_space<smem>>
    %462 = vector.broadcast %461 : f32 to vector<8x128xf32>
    %463 = arith.mulf %459, %462 : vector<8x128xf32>
    %464 = arith.addf %450, %463 : vector<8x128xf32>
    %c33_i32 = arith.constant 33 : i32
    %465 = arith.index_cast %c33_i32 : i32 to index
    %466 = memref.load %arg1[%465] : memref<80xf32, #tpu.memory_space<smem>>
    %467 = vector.broadcast %466 : f32 to vector<8x128xf32>
    %468 = arith.mulf %0, %467 : vector<8x128xf32>
    %469 = arith.index_cast %c33_i32 : i32 to index
    %470 = memref.load %arg2[%469] : memref<80xf32, #tpu.memory_space<smem>>
    %471 = vector.broadcast %470 : f32 to vector<8x128xf32>
    %472 = arith.addf %468, %471 : vector<8x128xf32>
    %473 = math.tanh %472 : vector<8x128xf32>
    %474 = arith.index_cast %c33_i32 : i32 to index
    %475 = memref.load %arg3[%474] : memref<80xf32, #tpu.memory_space<smem>>
    %476 = vector.broadcast %475 : f32 to vector<8x128xf32>
    %477 = arith.mulf %473, %476 : vector<8x128xf32>
    %478 = arith.addf %464, %477 : vector<8x128xf32>
    %c34_i32 = arith.constant 34 : i32
    %479 = arith.index_cast %c34_i32 : i32 to index
    %480 = memref.load %arg1[%479] : memref<80xf32, #tpu.memory_space<smem>>
    %481 = vector.broadcast %480 : f32 to vector<8x128xf32>
    %482 = arith.mulf %0, %481 : vector<8x128xf32>
    %483 = arith.index_cast %c34_i32 : i32 to index
    %484 = memref.load %arg2[%483] : memref<80xf32, #tpu.memory_space<smem>>
    %485 = vector.broadcast %484 : f32 to vector<8x128xf32>
    %486 = arith.addf %482, %485 : vector<8x128xf32>
    %487 = math.tanh %486 : vector<8x128xf32>
    %488 = arith.index_cast %c34_i32 : i32 to index
    %489 = memref.load %arg3[%488] : memref<80xf32, #tpu.memory_space<smem>>
    %490 = vector.broadcast %489 : f32 to vector<8x128xf32>
    %491 = arith.mulf %487, %490 : vector<8x128xf32>
    %492 = arith.addf %478, %491 : vector<8x128xf32>
    %c35_i32 = arith.constant 35 : i32
    %493 = arith.index_cast %c35_i32 : i32 to index
    %494 = memref.load %arg1[%493] : memref<80xf32, #tpu.memory_space<smem>>
    %495 = vector.broadcast %494 : f32 to vector<8x128xf32>
    %496 = arith.mulf %0, %495 : vector<8x128xf32>
    %497 = arith.index_cast %c35_i32 : i32 to index
    %498 = memref.load %arg2[%497] : memref<80xf32, #tpu.memory_space<smem>>
    %499 = vector.broadcast %498 : f32 to vector<8x128xf32>
    %500 = arith.addf %496, %499 : vector<8x128xf32>
    %501 = math.tanh %500 : vector<8x128xf32>
    %502 = arith.index_cast %c35_i32 : i32 to index
    %503 = memref.load %arg3[%502] : memref<80xf32, #tpu.memory_space<smem>>
    %504 = vector.broadcast %503 : f32 to vector<8x128xf32>
    %505 = arith.mulf %501, %504 : vector<8x128xf32>
    %506 = arith.addf %492, %505 : vector<8x128xf32>
    %c36_i32 = arith.constant 36 : i32
    %507 = arith.index_cast %c36_i32 : i32 to index
    %508 = memref.load %arg1[%507] : memref<80xf32, #tpu.memory_space<smem>>
    %509 = vector.broadcast %508 : f32 to vector<8x128xf32>
    %510 = arith.mulf %0, %509 : vector<8x128xf32>
    %511 = arith.index_cast %c36_i32 : i32 to index
    %512 = memref.load %arg2[%511] : memref<80xf32, #tpu.memory_space<smem>>
    %513 = vector.broadcast %512 : f32 to vector<8x128xf32>
    %514 = arith.addf %510, %513 : vector<8x128xf32>
    %515 = math.tanh %514 : vector<8x128xf32>
    %516 = arith.index_cast %c36_i32 : i32 to index
    %517 = memref.load %arg3[%516] : memref<80xf32, #tpu.memory_space<smem>>
    %518 = vector.broadcast %517 : f32 to vector<8x128xf32>
    %519 = arith.mulf %515, %518 : vector<8x128xf32>
    %520 = arith.addf %506, %519 : vector<8x128xf32>
    %c37_i32 = arith.constant 37 : i32
    %521 = arith.index_cast %c37_i32 : i32 to index
    %522 = memref.load %arg1[%521] : memref<80xf32, #tpu.memory_space<smem>>
    %523 = vector.broadcast %522 : f32 to vector<8x128xf32>
    %524 = arith.mulf %0, %523 : vector<8x128xf32>
    %525 = arith.index_cast %c37_i32 : i32 to index
    %526 = memref.load %arg2[%525] : memref<80xf32, #tpu.memory_space<smem>>
    %527 = vector.broadcast %526 : f32 to vector<8x128xf32>
    %528 = arith.addf %524, %527 : vector<8x128xf32>
    %529 = math.tanh %528 : vector<8x128xf32>
    %530 = arith.index_cast %c37_i32 : i32 to index
    %531 = memref.load %arg3[%530] : memref<80xf32, #tpu.memory_space<smem>>
    %532 = vector.broadcast %531 : f32 to vector<8x128xf32>
    %533 = arith.mulf %529, %532 : vector<8x128xf32>
    %534 = arith.addf %520, %533 : vector<8x128xf32>
    %c38_i32 = arith.constant 38 : i32
    %535 = arith.index_cast %c38_i32 : i32 to index
    %536 = memref.load %arg1[%535] : memref<80xf32, #tpu.memory_space<smem>>
    %537 = vector.broadcast %536 : f32 to vector<8x128xf32>
    %538 = arith.mulf %0, %537 : vector<8x128xf32>
    %539 = arith.index_cast %c38_i32 : i32 to index
    %540 = memref.load %arg2[%539] : memref<80xf32, #tpu.memory_space<smem>>
    %541 = vector.broadcast %540 : f32 to vector<8x128xf32>
    %542 = arith.addf %538, %541 : vector<8x128xf32>
    %543 = math.tanh %542 : vector<8x128xf32>
    %544 = arith.index_cast %c38_i32 : i32 to index
    %545 = memref.load %arg3[%544] : memref<80xf32, #tpu.memory_space<smem>>
    %546 = vector.broadcast %545 : f32 to vector<8x128xf32>
    %547 = arith.mulf %543, %546 : vector<8x128xf32>
    %548 = arith.addf %534, %547 : vector<8x128xf32>
    %c39_i32 = arith.constant 39 : i32
    %549 = arith.index_cast %c39_i32 : i32 to index
    %550 = memref.load %arg1[%549] : memref<80xf32, #tpu.memory_space<smem>>
    %551 = vector.broadcast %550 : f32 to vector<8x128xf32>
    %552 = arith.mulf %0, %551 : vector<8x128xf32>
    %553 = arith.index_cast %c39_i32 : i32 to index
    %554 = memref.load %arg2[%553] : memref<80xf32, #tpu.memory_space<smem>>
    %555 = vector.broadcast %554 : f32 to vector<8x128xf32>
    %556 = arith.addf %552, %555 : vector<8x128xf32>
    %557 = math.tanh %556 : vector<8x128xf32>
    %558 = arith.index_cast %c39_i32 : i32 to index
    %559 = memref.load %arg3[%558] : memref<80xf32, #tpu.memory_space<smem>>
    %560 = vector.broadcast %559 : f32 to vector<8x128xf32>
    %561 = arith.mulf %557, %560 : vector<8x128xf32>
    %562 = arith.addf %548, %561 : vector<8x128xf32>
    %c40_i32 = arith.constant 40 : i32
    %563 = arith.index_cast %c40_i32 : i32 to index
    %564 = memref.load %arg1[%563] : memref<80xf32, #tpu.memory_space<smem>>
    %565 = vector.broadcast %564 : f32 to vector<8x128xf32>
    %566 = arith.mulf %0, %565 : vector<8x128xf32>
    %567 = arith.index_cast %c40_i32 : i32 to index
    %568 = memref.load %arg2[%567] : memref<80xf32, #tpu.memory_space<smem>>
    %569 = vector.broadcast %568 : f32 to vector<8x128xf32>
    %570 = arith.addf %566, %569 : vector<8x128xf32>
    %571 = math.tanh %570 : vector<8x128xf32>
    %572 = arith.index_cast %c40_i32 : i32 to index
    %573 = memref.load %arg3[%572] : memref<80xf32, #tpu.memory_space<smem>>
    %574 = vector.broadcast %573 : f32 to vector<8x128xf32>
    %575 = arith.mulf %571, %574 : vector<8x128xf32>
    %576 = arith.addf %562, %575 : vector<8x128xf32>
    %c41_i32 = arith.constant 41 : i32
    %577 = arith.index_cast %c41_i32 : i32 to index
    %578 = memref.load %arg1[%577] : memref<80xf32, #tpu.memory_space<smem>>
    %579 = vector.broadcast %578 : f32 to vector<8x128xf32>
    %580 = arith.mulf %0, %579 : vector<8x128xf32>
    %581 = arith.index_cast %c41_i32 : i32 to index
    %582 = memref.load %arg2[%581] : memref<80xf32, #tpu.memory_space<smem>>
    %583 = vector.broadcast %582 : f32 to vector<8x128xf32>
    %584 = arith.addf %580, %583 : vector<8x128xf32>
    %585 = math.tanh %584 : vector<8x128xf32>
    %586 = arith.index_cast %c41_i32 : i32 to index
    %587 = memref.load %arg3[%586] : memref<80xf32, #tpu.memory_space<smem>>
    %588 = vector.broadcast %587 : f32 to vector<8x128xf32>
    %589 = arith.mulf %585, %588 : vector<8x128xf32>
    %590 = arith.addf %576, %589 : vector<8x128xf32>
    %c42_i32 = arith.constant 42 : i32
    %591 = arith.index_cast %c42_i32 : i32 to index
    %592 = memref.load %arg1[%591] : memref<80xf32, #tpu.memory_space<smem>>
    %593 = vector.broadcast %592 : f32 to vector<8x128xf32>
    %594 = arith.mulf %0, %593 : vector<8x128xf32>
    %595 = arith.index_cast %c42_i32 : i32 to index
    %596 = memref.load %arg2[%595] : memref<80xf32, #tpu.memory_space<smem>>
    %597 = vector.broadcast %596 : f32 to vector<8x128xf32>
    %598 = arith.addf %594, %597 : vector<8x128xf32>
    %599 = math.tanh %598 : vector<8x128xf32>
    %600 = arith.index_cast %c42_i32 : i32 to index
    %601 = memref.load %arg3[%600] : memref<80xf32, #tpu.memory_space<smem>>
    %602 = vector.broadcast %601 : f32 to vector<8x128xf32>
    %603 = arith.mulf %599, %602 : vector<8x128xf32>
    %604 = arith.addf %590, %603 : vector<8x128xf32>
    %c43_i32 = arith.constant 43 : i32
    %605 = arith.index_cast %c43_i32 : i32 to index
    %606 = memref.load %arg1[%605] : memref<80xf32, #tpu.memory_space<smem>>
    %607 = vector.broadcast %606 : f32 to vector<8x128xf32>
    %608 = arith.mulf %0, %607 : vector<8x128xf32>
    %609 = arith.index_cast %c43_i32 : i32 to index
    %610 = memref.load %arg2[%609] : memref<80xf32, #tpu.memory_space<smem>>
    %611 = vector.broadcast %610 : f32 to vector<8x128xf32>
    %612 = arith.addf %608, %611 : vector<8x128xf32>
    %613 = math.tanh %612 : vector<8x128xf32>
    %614 = arith.index_cast %c43_i32 : i32 to index
    %615 = memref.load %arg3[%614] : memref<80xf32, #tpu.memory_space<smem>>
    %616 = vector.broadcast %615 : f32 to vector<8x128xf32>
    %617 = arith.mulf %613, %616 : vector<8x128xf32>
    %618 = arith.addf %604, %617 : vector<8x128xf32>
    %c44_i32 = arith.constant 44 : i32
    %619 = arith.index_cast %c44_i32 : i32 to index
    %620 = memref.load %arg1[%619] : memref<80xf32, #tpu.memory_space<smem>>
    %621 = vector.broadcast %620 : f32 to vector<8x128xf32>
    %622 = arith.mulf %0, %621 : vector<8x128xf32>
    %623 = arith.index_cast %c44_i32 : i32 to index
    %624 = memref.load %arg2[%623] : memref<80xf32, #tpu.memory_space<smem>>
    %625 = vector.broadcast %624 : f32 to vector<8x128xf32>
    %626 = arith.addf %622, %625 : vector<8x128xf32>
    %627 = math.tanh %626 : vector<8x128xf32>
    %628 = arith.index_cast %c44_i32 : i32 to index
    %629 = memref.load %arg3[%628] : memref<80xf32, #tpu.memory_space<smem>>
    %630 = vector.broadcast %629 : f32 to vector<8x128xf32>
    %631 = arith.mulf %627, %630 : vector<8x128xf32>
    %632 = arith.addf %618, %631 : vector<8x128xf32>
    %c45_i32 = arith.constant 45 : i32
    %633 = arith.index_cast %c45_i32 : i32 to index
    %634 = memref.load %arg1[%633] : memref<80xf32, #tpu.memory_space<smem>>
    %635 = vector.broadcast %634 : f32 to vector<8x128xf32>
    %636 = arith.mulf %0, %635 : vector<8x128xf32>
    %637 = arith.index_cast %c45_i32 : i32 to index
    %638 = memref.load %arg2[%637] : memref<80xf32, #tpu.memory_space<smem>>
    %639 = vector.broadcast %638 : f32 to vector<8x128xf32>
    %640 = arith.addf %636, %639 : vector<8x128xf32>
    %641 = math.tanh %640 : vector<8x128xf32>
    %642 = arith.index_cast %c45_i32 : i32 to index
    %643 = memref.load %arg3[%642] : memref<80xf32, #tpu.memory_space<smem>>
    %644 = vector.broadcast %643 : f32 to vector<8x128xf32>
    %645 = arith.mulf %641, %644 : vector<8x128xf32>
    %646 = arith.addf %632, %645 : vector<8x128xf32>
    %c46_i32 = arith.constant 46 : i32
    %647 = arith.index_cast %c46_i32 : i32 to index
    %648 = memref.load %arg1[%647] : memref<80xf32, #tpu.memory_space<smem>>
    %649 = vector.broadcast %648 : f32 to vector<8x128xf32>
    %650 = arith.mulf %0, %649 : vector<8x128xf32>
    %651 = arith.index_cast %c46_i32 : i32 to index
    %652 = memref.load %arg2[%651] : memref<80xf32, #tpu.memory_space<smem>>
    %653 = vector.broadcast %652 : f32 to vector<8x128xf32>
    %654 = arith.addf %650, %653 : vector<8x128xf32>
    %655 = math.tanh %654 : vector<8x128xf32>
    %656 = arith.index_cast %c46_i32 : i32 to index
    %657 = memref.load %arg3[%656] : memref<80xf32, #tpu.memory_space<smem>>
    %658 = vector.broadcast %657 : f32 to vector<8x128xf32>
    %659 = arith.mulf %655, %658 : vector<8x128xf32>
    %660 = arith.addf %646, %659 : vector<8x128xf32>
    %c47_i32 = arith.constant 47 : i32
    %661 = arith.index_cast %c47_i32 : i32 to index
    %662 = memref.load %arg1[%661] : memref<80xf32, #tpu.memory_space<smem>>
    %663 = vector.broadcast %662 : f32 to vector<8x128xf32>
    %664 = arith.mulf %0, %663 : vector<8x128xf32>
    %665 = arith.index_cast %c47_i32 : i32 to index
    %666 = memref.load %arg2[%665] : memref<80xf32, #tpu.memory_space<smem>>
    %667 = vector.broadcast %666 : f32 to vector<8x128xf32>
    %668 = arith.addf %664, %667 : vector<8x128xf32>
    %669 = math.tanh %668 : vector<8x128xf32>
    %670 = arith.index_cast %c47_i32 : i32 to index
    %671 = memref.load %arg3[%670] : memref<80xf32, #tpu.memory_space<smem>>
    %672 = vector.broadcast %671 : f32 to vector<8x128xf32>
    %673 = arith.mulf %669, %672 : vector<8x128xf32>
    %674 = arith.addf %660, %673 : vector<8x128xf32>
    %c48_i32 = arith.constant 48 : i32
    %675 = arith.index_cast %c48_i32 : i32 to index
    %676 = memref.load %arg1[%675] : memref<80xf32, #tpu.memory_space<smem>>
    %677 = vector.broadcast %676 : f32 to vector<8x128xf32>
    %678 = arith.mulf %0, %677 : vector<8x128xf32>
    %679 = arith.index_cast %c48_i32 : i32 to index
    %680 = memref.load %arg2[%679] : memref<80xf32, #tpu.memory_space<smem>>
    %681 = vector.broadcast %680 : f32 to vector<8x128xf32>
    %682 = arith.addf %678, %681 : vector<8x128xf32>
    %683 = math.tanh %682 : vector<8x128xf32>
    %684 = arith.index_cast %c48_i32 : i32 to index
    %685 = memref.load %arg3[%684] : memref<80xf32, #tpu.memory_space<smem>>
    %686 = vector.broadcast %685 : f32 to vector<8x128xf32>
    %687 = arith.mulf %683, %686 : vector<8x128xf32>
    %688 = arith.addf %674, %687 : vector<8x128xf32>
    %c49_i32 = arith.constant 49 : i32
    %689 = arith.index_cast %c49_i32 : i32 to index
    %690 = memref.load %arg1[%689] : memref<80xf32, #tpu.memory_space<smem>>
    %691 = vector.broadcast %690 : f32 to vector<8x128xf32>
    %692 = arith.mulf %0, %691 : vector<8x128xf32>
    %693 = arith.index_cast %c49_i32 : i32 to index
    %694 = memref.load %arg2[%693] : memref<80xf32, #tpu.memory_space<smem>>
    %695 = vector.broadcast %694 : f32 to vector<8x128xf32>
    %696 = arith.addf %692, %695 : vector<8x128xf32>
    %697 = math.tanh %696 : vector<8x128xf32>
    %698 = arith.index_cast %c49_i32 : i32 to index
    %699 = memref.load %arg3[%698] : memref<80xf32, #tpu.memory_space<smem>>
    %700 = vector.broadcast %699 : f32 to vector<8x128xf32>
    %701 = arith.mulf %697, %700 : vector<8x128xf32>
    %702 = arith.addf %688, %701 : vector<8x128xf32>
    %c50_i32 = arith.constant 50 : i32
    %703 = arith.index_cast %c50_i32 : i32 to index
    %704 = memref.load %arg1[%703] : memref<80xf32, #tpu.memory_space<smem>>
    %705 = vector.broadcast %704 : f32 to vector<8x128xf32>
    %706 = arith.mulf %0, %705 : vector<8x128xf32>
    %707 = arith.index_cast %c50_i32 : i32 to index
    %708 = memref.load %arg2[%707] : memref<80xf32, #tpu.memory_space<smem>>
    %709 = vector.broadcast %708 : f32 to vector<8x128xf32>
    %710 = arith.addf %706, %709 : vector<8x128xf32>
    %711 = math.tanh %710 : vector<8x128xf32>
    %712 = arith.index_cast %c50_i32 : i32 to index
    %713 = memref.load %arg3[%712] : memref<80xf32, #tpu.memory_space<smem>>
    %714 = vector.broadcast %713 : f32 to vector<8x128xf32>
    %715 = arith.mulf %711, %714 : vector<8x128xf32>
    %716 = arith.addf %702, %715 : vector<8x128xf32>
    %c51_i32 = arith.constant 51 : i32
    %717 = arith.index_cast %c51_i32 : i32 to index
    %718 = memref.load %arg1[%717] : memref<80xf32, #tpu.memory_space<smem>>
    %719 = vector.broadcast %718 : f32 to vector<8x128xf32>
    %720 = arith.mulf %0, %719 : vector<8x128xf32>
    %721 = arith.index_cast %c51_i32 : i32 to index
    %722 = memref.load %arg2[%721] : memref<80xf32, #tpu.memory_space<smem>>
    %723 = vector.broadcast %722 : f32 to vector<8x128xf32>
    %724 = arith.addf %720, %723 : vector<8x128xf32>
    %725 = math.tanh %724 : vector<8x128xf32>
    %726 = arith.index_cast %c51_i32 : i32 to index
    %727 = memref.load %arg3[%726] : memref<80xf32, #tpu.memory_space<smem>>
    %728 = vector.broadcast %727 : f32 to vector<8x128xf32>
    %729 = arith.mulf %725, %728 : vector<8x128xf32>
    %730 = arith.addf %716, %729 : vector<8x128xf32>
    %c52_i32 = arith.constant 52 : i32
    %731 = arith.index_cast %c52_i32 : i32 to index
    %732 = memref.load %arg1[%731] : memref<80xf32, #tpu.memory_space<smem>>
    %733 = vector.broadcast %732 : f32 to vector<8x128xf32>
    %734 = arith.mulf %0, %733 : vector<8x128xf32>
    %735 = arith.index_cast %c52_i32 : i32 to index
    %736 = memref.load %arg2[%735] : memref<80xf32, #tpu.memory_space<smem>>
    %737 = vector.broadcast %736 : f32 to vector<8x128xf32>
    %738 = arith.addf %734, %737 : vector<8x128xf32>
    %739 = math.tanh %738 : vector<8x128xf32>
    %740 = arith.index_cast %c52_i32 : i32 to index
    %741 = memref.load %arg3[%740] : memref<80xf32, #tpu.memory_space<smem>>
    %742 = vector.broadcast %741 : f32 to vector<8x128xf32>
    %743 = arith.mulf %739, %742 : vector<8x128xf32>
    %744 = arith.addf %730, %743 : vector<8x128xf32>
    %c53_i32 = arith.constant 53 : i32
    %745 = arith.index_cast %c53_i32 : i32 to index
    %746 = memref.load %arg1[%745] : memref<80xf32, #tpu.memory_space<smem>>
    %747 = vector.broadcast %746 : f32 to vector<8x128xf32>
    %748 = arith.mulf %0, %747 : vector<8x128xf32>
    %749 = arith.index_cast %c53_i32 : i32 to index
    %750 = memref.load %arg2[%749] : memref<80xf32, #tpu.memory_space<smem>>
    %751 = vector.broadcast %750 : f32 to vector<8x128xf32>
    %752 = arith.addf %748, %751 : vector<8x128xf32>
    %753 = math.tanh %752 : vector<8x128xf32>
    %754 = arith.index_cast %c53_i32 : i32 to index
    %755 = memref.load %arg3[%754] : memref<80xf32, #tpu.memory_space<smem>>
    %756 = vector.broadcast %755 : f32 to vector<8x128xf32>
    %757 = arith.mulf %753, %756 : vector<8x128xf32>
    %758 = arith.addf %744, %757 : vector<8x128xf32>
    %c54_i32 = arith.constant 54 : i32
    %759 = arith.index_cast %c54_i32 : i32 to index
    %760 = memref.load %arg1[%759] : memref<80xf32, #tpu.memory_space<smem>>
    %761 = vector.broadcast %760 : f32 to vector<8x128xf32>
    %762 = arith.mulf %0, %761 : vector<8x128xf32>
    %763 = arith.index_cast %c54_i32 : i32 to index
    %764 = memref.load %arg2[%763] : memref<80xf32, #tpu.memory_space<smem>>
    %765 = vector.broadcast %764 : f32 to vector<8x128xf32>
    %766 = arith.addf %762, %765 : vector<8x128xf32>
    %767 = math.tanh %766 : vector<8x128xf32>
    %768 = arith.index_cast %c54_i32 : i32 to index
    %769 = memref.load %arg3[%768] : memref<80xf32, #tpu.memory_space<smem>>
    %770 = vector.broadcast %769 : f32 to vector<8x128xf32>
    %771 = arith.mulf %767, %770 : vector<8x128xf32>
    %772 = arith.addf %758, %771 : vector<8x128xf32>
    %c55_i32 = arith.constant 55 : i32
    %773 = arith.index_cast %c55_i32 : i32 to index
    %774 = memref.load %arg1[%773] : memref<80xf32, #tpu.memory_space<smem>>
    %775 = vector.broadcast %774 : f32 to vector<8x128xf32>
    %776 = arith.mulf %0, %775 : vector<8x128xf32>
    %777 = arith.index_cast %c55_i32 : i32 to index
    %778 = memref.load %arg2[%777] : memref<80xf32, #tpu.memory_space<smem>>
    %779 = vector.broadcast %778 : f32 to vector<8x128xf32>
    %780 = arith.addf %776, %779 : vector<8x128xf32>
    %781 = math.tanh %780 : vector<8x128xf32>
    %782 = arith.index_cast %c55_i32 : i32 to index
    %783 = memref.load %arg3[%782] : memref<80xf32, #tpu.memory_space<smem>>
    %784 = vector.broadcast %783 : f32 to vector<8x128xf32>
    %785 = arith.mulf %781, %784 : vector<8x128xf32>
    %786 = arith.addf %772, %785 : vector<8x128xf32>
    %c56_i32 = arith.constant 56 : i32
    %787 = arith.index_cast %c56_i32 : i32 to index
    %788 = memref.load %arg1[%787] : memref<80xf32, #tpu.memory_space<smem>>
    %789 = vector.broadcast %788 : f32 to vector<8x128xf32>
    %790 = arith.mulf %0, %789 : vector<8x128xf32>
    %791 = arith.index_cast %c56_i32 : i32 to index
    %792 = memref.load %arg2[%791] : memref<80xf32, #tpu.memory_space<smem>>
    %793 = vector.broadcast %792 : f32 to vector<8x128xf32>
    %794 = arith.addf %790, %793 : vector<8x128xf32>
    %795 = math.tanh %794 : vector<8x128xf32>
    %796 = arith.index_cast %c56_i32 : i32 to index
    %797 = memref.load %arg3[%796] : memref<80xf32, #tpu.memory_space<smem>>
    %798 = vector.broadcast %797 : f32 to vector<8x128xf32>
    %799 = arith.mulf %795, %798 : vector<8x128xf32>
    %800 = arith.addf %786, %799 : vector<8x128xf32>
    %c57_i32 = arith.constant 57 : i32
    %801 = arith.index_cast %c57_i32 : i32 to index
    %802 = memref.load %arg1[%801] : memref<80xf32, #tpu.memory_space<smem>>
    %803 = vector.broadcast %802 : f32 to vector<8x128xf32>
    %804 = arith.mulf %0, %803 : vector<8x128xf32>
    %805 = arith.index_cast %c57_i32 : i32 to index
    %806 = memref.load %arg2[%805] : memref<80xf32, #tpu.memory_space<smem>>
    %807 = vector.broadcast %806 : f32 to vector<8x128xf32>
    %808 = arith.addf %804, %807 : vector<8x128xf32>
    %809 = math.tanh %808 : vector<8x128xf32>
    %810 = arith.index_cast %c57_i32 : i32 to index
    %811 = memref.load %arg3[%810] : memref<80xf32, #tpu.memory_space<smem>>
    %812 = vector.broadcast %811 : f32 to vector<8x128xf32>
    %813 = arith.mulf %809, %812 : vector<8x128xf32>
    %814 = arith.addf %800, %813 : vector<8x128xf32>
    %c58_i32 = arith.constant 58 : i32
    %815 = arith.index_cast %c58_i32 : i32 to index
    %816 = memref.load %arg1[%815] : memref<80xf32, #tpu.memory_space<smem>>
    %817 = vector.broadcast %816 : f32 to vector<8x128xf32>
    %818 = arith.mulf %0, %817 : vector<8x128xf32>
    %819 = arith.index_cast %c58_i32 : i32 to index
    %820 = memref.load %arg2[%819] : memref<80xf32, #tpu.memory_space<smem>>
    %821 = vector.broadcast %820 : f32 to vector<8x128xf32>
    %822 = arith.addf %818, %821 : vector<8x128xf32>
    %823 = math.tanh %822 : vector<8x128xf32>
    %824 = arith.index_cast %c58_i32 : i32 to index
    %825 = memref.load %arg3[%824] : memref<80xf32, #tpu.memory_space<smem>>
    %826 = vector.broadcast %825 : f32 to vector<8x128xf32>
    %827 = arith.mulf %823, %826 : vector<8x128xf32>
    %828 = arith.addf %814, %827 : vector<8x128xf32>
    %c59_i32 = arith.constant 59 : i32
    %829 = arith.index_cast %c59_i32 : i32 to index
    %830 = memref.load %arg1[%829] : memref<80xf32, #tpu.memory_space<smem>>
    %831 = vector.broadcast %830 : f32 to vector<8x128xf32>
    %832 = arith.mulf %0, %831 : vector<8x128xf32>
    %833 = arith.index_cast %c59_i32 : i32 to index
    %834 = memref.load %arg2[%833] : memref<80xf32, #tpu.memory_space<smem>>
    %835 = vector.broadcast %834 : f32 to vector<8x128xf32>
    %836 = arith.addf %832, %835 : vector<8x128xf32>
    %837 = math.tanh %836 : vector<8x128xf32>
    %838 = arith.index_cast %c59_i32 : i32 to index
    %839 = memref.load %arg3[%838] : memref<80xf32, #tpu.memory_space<smem>>
    %840 = vector.broadcast %839 : f32 to vector<8x128xf32>
    %841 = arith.mulf %837, %840 : vector<8x128xf32>
    %842 = arith.addf %828, %841 : vector<8x128xf32>
    %c60_i32 = arith.constant 60 : i32
    %843 = arith.index_cast %c60_i32 : i32 to index
    %844 = memref.load %arg1[%843] : memref<80xf32, #tpu.memory_space<smem>>
    %845 = vector.broadcast %844 : f32 to vector<8x128xf32>
    %846 = arith.mulf %0, %845 : vector<8x128xf32>
    %847 = arith.index_cast %c60_i32 : i32 to index
    %848 = memref.load %arg2[%847] : memref<80xf32, #tpu.memory_space<smem>>
    %849 = vector.broadcast %848 : f32 to vector<8x128xf32>
    %850 = arith.addf %846, %849 : vector<8x128xf32>
    %851 = math.tanh %850 : vector<8x128xf32>
    %852 = arith.index_cast %c60_i32 : i32 to index
    %853 = memref.load %arg3[%852] : memref<80xf32, #tpu.memory_space<smem>>
    %854 = vector.broadcast %853 : f32 to vector<8x128xf32>
    %855 = arith.mulf %851, %854 : vector<8x128xf32>
    %856 = arith.addf %842, %855 : vector<8x128xf32>
    %c61_i32 = arith.constant 61 : i32
    %857 = arith.index_cast %c61_i32 : i32 to index
    %858 = memref.load %arg1[%857] : memref<80xf32, #tpu.memory_space<smem>>
    %859 = vector.broadcast %858 : f32 to vector<8x128xf32>
    %860 = arith.mulf %0, %859 : vector<8x128xf32>
    %861 = arith.index_cast %c61_i32 : i32 to index
    %862 = memref.load %arg2[%861] : memref<80xf32, #tpu.memory_space<smem>>
    %863 = vector.broadcast %862 : f32 to vector<8x128xf32>
    %864 = arith.addf %860, %863 : vector<8x128xf32>
    %865 = math.tanh %864 : vector<8x128xf32>
    %866 = arith.index_cast %c61_i32 : i32 to index
    %867 = memref.load %arg3[%866] : memref<80xf32, #tpu.memory_space<smem>>
    %868 = vector.broadcast %867 : f32 to vector<8x128xf32>
    %869 = arith.mulf %865, %868 : vector<8x128xf32>
    %870 = arith.addf %856, %869 : vector<8x128xf32>
    %c62_i32 = arith.constant 62 : i32
    %871 = arith.index_cast %c62_i32 : i32 to index
    %872 = memref.load %arg1[%871] : memref<80xf32, #tpu.memory_space<smem>>
    %873 = vector.broadcast %872 : f32 to vector<8x128xf32>
    %874 = arith.mulf %0, %873 : vector<8x128xf32>
    %875 = arith.index_cast %c62_i32 : i32 to index
    %876 = memref.load %arg2[%875] : memref<80xf32, #tpu.memory_space<smem>>
    %877 = vector.broadcast %876 : f32 to vector<8x128xf32>
    %878 = arith.addf %874, %877 : vector<8x128xf32>
    %879 = math.tanh %878 : vector<8x128xf32>
    %880 = arith.index_cast %c62_i32 : i32 to index
    %881 = memref.load %arg3[%880] : memref<80xf32, #tpu.memory_space<smem>>
    %882 = vector.broadcast %881 : f32 to vector<8x128xf32>
    %883 = arith.mulf %879, %882 : vector<8x128xf32>
    %884 = arith.addf %870, %883 : vector<8x128xf32>
    %c63_i32 = arith.constant 63 : i32
    %885 = arith.index_cast %c63_i32 : i32 to index
    %886 = memref.load %arg1[%885] : memref<80xf32, #tpu.memory_space<smem>>
    %887 = vector.broadcast %886 : f32 to vector<8x128xf32>
    %888 = arith.mulf %0, %887 : vector<8x128xf32>
    %889 = arith.index_cast %c63_i32 : i32 to index
    %890 = memref.load %arg2[%889] : memref<80xf32, #tpu.memory_space<smem>>
    %891 = vector.broadcast %890 : f32 to vector<8x128xf32>
    %892 = arith.addf %888, %891 : vector<8x128xf32>
    %893 = math.tanh %892 : vector<8x128xf32>
    %894 = arith.index_cast %c63_i32 : i32 to index
    %895 = memref.load %arg3[%894] : memref<80xf32, #tpu.memory_space<smem>>
    %896 = vector.broadcast %895 : f32 to vector<8x128xf32>
    %897 = arith.mulf %893, %896 : vector<8x128xf32>
    %898 = arith.addf %884, %897 : vector<8x128xf32>
    %c64_i32 = arith.constant 64 : i32
    %899 = arith.index_cast %c64_i32 : i32 to index
    %900 = memref.load %arg1[%899] : memref<80xf32, #tpu.memory_space<smem>>
    %901 = vector.broadcast %900 : f32 to vector<8x128xf32>
    %902 = arith.mulf %0, %901 : vector<8x128xf32>
    %903 = arith.index_cast %c64_i32 : i32 to index
    %904 = memref.load %arg2[%903] : memref<80xf32, #tpu.memory_space<smem>>
    %905 = vector.broadcast %904 : f32 to vector<8x128xf32>
    %906 = arith.addf %902, %905 : vector<8x128xf32>
    %907 = math.tanh %906 : vector<8x128xf32>
    %908 = arith.index_cast %c64_i32 : i32 to index
    %909 = memref.load %arg3[%908] : memref<80xf32, #tpu.memory_space<smem>>
    %910 = vector.broadcast %909 : f32 to vector<8x128xf32>
    %911 = arith.mulf %907, %910 : vector<8x128xf32>
    %912 = arith.addf %898, %911 : vector<8x128xf32>
    %c65_i32 = arith.constant 65 : i32
    %913 = arith.index_cast %c65_i32 : i32 to index
    %914 = memref.load %arg1[%913] : memref<80xf32, #tpu.memory_space<smem>>
    %915 = vector.broadcast %914 : f32 to vector<8x128xf32>
    %916 = arith.mulf %0, %915 : vector<8x128xf32>
    %917 = arith.index_cast %c65_i32 : i32 to index
    %918 = memref.load %arg2[%917] : memref<80xf32, #tpu.memory_space<smem>>
    %919 = vector.broadcast %918 : f32 to vector<8x128xf32>
    %920 = arith.addf %916, %919 : vector<8x128xf32>
    %921 = math.tanh %920 : vector<8x128xf32>
    %922 = arith.index_cast %c65_i32 : i32 to index
    %923 = memref.load %arg3[%922] : memref<80xf32, #tpu.memory_space<smem>>
    %924 = vector.broadcast %923 : f32 to vector<8x128xf32>
    %925 = arith.mulf %921, %924 : vector<8x128xf32>
    %926 = arith.addf %912, %925 : vector<8x128xf32>
    %c66_i32 = arith.constant 66 : i32
    %927 = arith.index_cast %c66_i32 : i32 to index
    %928 = memref.load %arg1[%927] : memref<80xf32, #tpu.memory_space<smem>>
    %929 = vector.broadcast %928 : f32 to vector<8x128xf32>
    %930 = arith.mulf %0, %929 : vector<8x128xf32>
    %931 = arith.index_cast %c66_i32 : i32 to index
    %932 = memref.load %arg2[%931] : memref<80xf32, #tpu.memory_space<smem>>
    %933 = vector.broadcast %932 : f32 to vector<8x128xf32>
    %934 = arith.addf %930, %933 : vector<8x128xf32>
    %935 = math.tanh %934 : vector<8x128xf32>
    %936 = arith.index_cast %c66_i32 : i32 to index
    %937 = memref.load %arg3[%936] : memref<80xf32, #tpu.memory_space<smem>>
    %938 = vector.broadcast %937 : f32 to vector<8x128xf32>
    %939 = arith.mulf %935, %938 : vector<8x128xf32>
    %940 = arith.addf %926, %939 : vector<8x128xf32>
    %c67_i32 = arith.constant 67 : i32
    %941 = arith.index_cast %c67_i32 : i32 to index
    %942 = memref.load %arg1[%941] : memref<80xf32, #tpu.memory_space<smem>>
    %943 = vector.broadcast %942 : f32 to vector<8x128xf32>
    %944 = arith.mulf %0, %943 : vector<8x128xf32>
    %945 = arith.index_cast %c67_i32 : i32 to index
    %946 = memref.load %arg2[%945] : memref<80xf32, #tpu.memory_space<smem>>
    %947 = vector.broadcast %946 : f32 to vector<8x128xf32>
    %948 = arith.addf %944, %947 : vector<8x128xf32>
    %949 = math.tanh %948 : vector<8x128xf32>
    %950 = arith.index_cast %c67_i32 : i32 to index
    %951 = memref.load %arg3[%950] : memref<80xf32, #tpu.memory_space<smem>>
    %952 = vector.broadcast %951 : f32 to vector<8x128xf32>
    %953 = arith.mulf %949, %952 : vector<8x128xf32>
    %954 = arith.addf %940, %953 : vector<8x128xf32>
    %c68_i32 = arith.constant 68 : i32
    %955 = arith.index_cast %c68_i32 : i32 to index
    %956 = memref.load %arg1[%955] : memref<80xf32, #tpu.memory_space<smem>>
    %957 = vector.broadcast %956 : f32 to vector<8x128xf32>
    %958 = arith.mulf %0, %957 : vector<8x128xf32>
    %959 = arith.index_cast %c68_i32 : i32 to index
    %960 = memref.load %arg2[%959] : memref<80xf32, #tpu.memory_space<smem>>
    %961 = vector.broadcast %960 : f32 to vector<8x128xf32>
    %962 = arith.addf %958, %961 : vector<8x128xf32>
    %963 = math.tanh %962 : vector<8x128xf32>
    %964 = arith.index_cast %c68_i32 : i32 to index
    %965 = memref.load %arg3[%964] : memref<80xf32, #tpu.memory_space<smem>>
    %966 = vector.broadcast %965 : f32 to vector<8x128xf32>
    %967 = arith.mulf %963, %966 : vector<8x128xf32>
    %968 = arith.addf %954, %967 : vector<8x128xf32>
    %c69_i32 = arith.constant 69 : i32
    %969 = arith.index_cast %c69_i32 : i32 to index
    %970 = memref.load %arg1[%969] : memref<80xf32, #tpu.memory_space<smem>>
    %971 = vector.broadcast %970 : f32 to vector<8x128xf32>
    %972 = arith.mulf %0, %971 : vector<8x128xf32>
    %973 = arith.index_cast %c69_i32 : i32 to index
    %974 = memref.load %arg2[%973] : memref<80xf32, #tpu.memory_space<smem>>
    %975 = vector.broadcast %974 : f32 to vector<8x128xf32>
    %976 = arith.addf %972, %975 : vector<8x128xf32>
    %977 = math.tanh %976 : vector<8x128xf32>
    %978 = arith.index_cast %c69_i32 : i32 to index
    %979 = memref.load %arg3[%978] : memref<80xf32, #tpu.memory_space<smem>>
    %980 = vector.broadcast %979 : f32 to vector<8x128xf32>
    %981 = arith.mulf %977, %980 : vector<8x128xf32>
    %982 = arith.addf %968, %981 : vector<8x128xf32>
    %c70_i32 = arith.constant 70 : i32
    %983 = arith.index_cast %c70_i32 : i32 to index
    %984 = memref.load %arg1[%983] : memref<80xf32, #tpu.memory_space<smem>>
    %985 = vector.broadcast %984 : f32 to vector<8x128xf32>
    %986 = arith.mulf %0, %985 : vector<8x128xf32>
    %987 = arith.index_cast %c70_i32 : i32 to index
    %988 = memref.load %arg2[%987] : memref<80xf32, #tpu.memory_space<smem>>
    %989 = vector.broadcast %988 : f32 to vector<8x128xf32>
    %990 = arith.addf %986, %989 : vector<8x128xf32>
    %991 = math.tanh %990 : vector<8x128xf32>
    %992 = arith.index_cast %c70_i32 : i32 to index
    %993 = memref.load %arg3[%992] : memref<80xf32, #tpu.memory_space<smem>>
    %994 = vector.broadcast %993 : f32 to vector<8x128xf32>
    %995 = arith.mulf %991, %994 : vector<8x128xf32>
    %996 = arith.addf %982, %995 : vector<8x128xf32>
    %c71_i32 = arith.constant 71 : i32
    %997 = arith.index_cast %c71_i32 : i32 to index
    %998 = memref.load %arg1[%997] : memref<80xf32, #tpu.memory_space<smem>>
    %999 = vector.broadcast %998 : f32 to vector<8x128xf32>
    %1000 = arith.mulf %0, %999 : vector<8x128xf32>
    %1001 = arith.index_cast %c71_i32 : i32 to index
    %1002 = memref.load %arg2[%1001] : memref<80xf32, #tpu.memory_space<smem>>
    %1003 = vector.broadcast %1002 : f32 to vector<8x128xf32>
    %1004 = arith.addf %1000, %1003 : vector<8x128xf32>
    %1005 = math.tanh %1004 : vector<8x128xf32>
    %1006 = arith.index_cast %c71_i32 : i32 to index
    %1007 = memref.load %arg3[%1006] : memref<80xf32, #tpu.memory_space<smem>>
    %1008 = vector.broadcast %1007 : f32 to vector<8x128xf32>
    %1009 = arith.mulf %1005, %1008 : vector<8x128xf32>
    %1010 = arith.addf %996, %1009 : vector<8x128xf32>
    %c72_i32 = arith.constant 72 : i32
    %1011 = arith.index_cast %c72_i32 : i32 to index
    %1012 = memref.load %arg1[%1011] : memref<80xf32, #tpu.memory_space<smem>>
    %1013 = vector.broadcast %1012 : f32 to vector<8x128xf32>
    %1014 = arith.mulf %0, %1013 : vector<8x128xf32>
    %1015 = arith.index_cast %c72_i32 : i32 to index
    %1016 = memref.load %arg2[%1015] : memref<80xf32, #tpu.memory_space<smem>>
    %1017 = vector.broadcast %1016 : f32 to vector<8x128xf32>
    %1018 = arith.addf %1014, %1017 : vector<8x128xf32>
    %1019 = math.tanh %1018 : vector<8x128xf32>
    %1020 = arith.index_cast %c72_i32 : i32 to index
    %1021 = memref.load %arg3[%1020] : memref<80xf32, #tpu.memory_space<smem>>
    %1022 = vector.broadcast %1021 : f32 to vector<8x128xf32>
    %1023 = arith.mulf %1019, %1022 : vector<8x128xf32>
    %1024 = arith.addf %1010, %1023 : vector<8x128xf32>
    %c73_i32 = arith.constant 73 : i32
    %1025 = arith.index_cast %c73_i32 : i32 to index
    %1026 = memref.load %arg1[%1025] : memref<80xf32, #tpu.memory_space<smem>>
    %1027 = vector.broadcast %1026 : f32 to vector<8x128xf32>
    %1028 = arith.mulf %0, %1027 : vector<8x128xf32>
    %1029 = arith.index_cast %c73_i32 : i32 to index
    %1030 = memref.load %arg2[%1029] : memref<80xf32, #tpu.memory_space<smem>>
    %1031 = vector.broadcast %1030 : f32 to vector<8x128xf32>
    %1032 = arith.addf %1028, %1031 : vector<8x128xf32>
    %1033 = math.tanh %1032 : vector<8x128xf32>
    %1034 = arith.index_cast %c73_i32 : i32 to index
    %1035 = memref.load %arg3[%1034] : memref<80xf32, #tpu.memory_space<smem>>
    %1036 = vector.broadcast %1035 : f32 to vector<8x128xf32>
    %1037 = arith.mulf %1033, %1036 : vector<8x128xf32>
    %1038 = arith.addf %1024, %1037 : vector<8x128xf32>
    %c74_i32 = arith.constant 74 : i32
    %1039 = arith.index_cast %c74_i32 : i32 to index
    %1040 = memref.load %arg1[%1039] : memref<80xf32, #tpu.memory_space<smem>>
    %1041 = vector.broadcast %1040 : f32 to vector<8x128xf32>
    %1042 = arith.mulf %0, %1041 : vector<8x128xf32>
    %1043 = arith.index_cast %c74_i32 : i32 to index
    %1044 = memref.load %arg2[%1043] : memref<80xf32, #tpu.memory_space<smem>>
    %1045 = vector.broadcast %1044 : f32 to vector<8x128xf32>
    %1046 = arith.addf %1042, %1045 : vector<8x128xf32>
    %1047 = math.tanh %1046 : vector<8x128xf32>
    %1048 = arith.index_cast %c74_i32 : i32 to index
    %1049 = memref.load %arg3[%1048] : memref<80xf32, #tpu.memory_space<smem>>
    %1050 = vector.broadcast %1049 : f32 to vector<8x128xf32>
    %1051 = arith.mulf %1047, %1050 : vector<8x128xf32>
    %1052 = arith.addf %1038, %1051 : vector<8x128xf32>
    %c75_i32 = arith.constant 75 : i32
    %1053 = arith.index_cast %c75_i32 : i32 to index
    %1054 = memref.load %arg1[%1053] : memref<80xf32, #tpu.memory_space<smem>>
    %1055 = vector.broadcast %1054 : f32 to vector<8x128xf32>
    %1056 = arith.mulf %0, %1055 : vector<8x128xf32>
    %1057 = arith.index_cast %c75_i32 : i32 to index
    %1058 = memref.load %arg2[%1057] : memref<80xf32, #tpu.memory_space<smem>>
    %1059 = vector.broadcast %1058 : f32 to vector<8x128xf32>
    %1060 = arith.addf %1056, %1059 : vector<8x128xf32>
    %1061 = math.tanh %1060 : vector<8x128xf32>
    %1062 = arith.index_cast %c75_i32 : i32 to index
    %1063 = memref.load %arg3[%1062] : memref<80xf32, #tpu.memory_space<smem>>
    %1064 = vector.broadcast %1063 : f32 to vector<8x128xf32>
    %1065 = arith.mulf %1061, %1064 : vector<8x128xf32>
    %1066 = arith.addf %1052, %1065 : vector<8x128xf32>
    %c76_i32 = arith.constant 76 : i32
    %1067 = arith.index_cast %c76_i32 : i32 to index
    %1068 = memref.load %arg1[%1067] : memref<80xf32, #tpu.memory_space<smem>>
    %1069 = vector.broadcast %1068 : f32 to vector<8x128xf32>
    %1070 = arith.mulf %0, %1069 : vector<8x128xf32>
    %1071 = arith.index_cast %c76_i32 : i32 to index
    %1072 = memref.load %arg2[%1071] : memref<80xf32, #tpu.memory_space<smem>>
    %1073 = vector.broadcast %1072 : f32 to vector<8x128xf32>
    %1074 = arith.addf %1070, %1073 : vector<8x128xf32>
    %1075 = math.tanh %1074 : vector<8x128xf32>
    %1076 = arith.index_cast %c76_i32 : i32 to index
    %1077 = memref.load %arg3[%1076] : memref<80xf32, #tpu.memory_space<smem>>
    %1078 = vector.broadcast %1077 : f32 to vector<8x128xf32>
    %1079 = arith.mulf %1075, %1078 : vector<8x128xf32>
    %1080 = arith.addf %1066, %1079 : vector<8x128xf32>
    %c77_i32 = arith.constant 77 : i32
    %1081 = arith.index_cast %c77_i32 : i32 to index
    %1082 = memref.load %arg1[%1081] : memref<80xf32, #tpu.memory_space<smem>>
    %1083 = vector.broadcast %1082 : f32 to vector<8x128xf32>
    %1084 = arith.mulf %0, %1083 : vector<8x128xf32>
    %1085 = arith.index_cast %c77_i32 : i32 to index
    %1086 = memref.load %arg2[%1085] : memref<80xf32, #tpu.memory_space<smem>>
    %1087 = vector.broadcast %1086 : f32 to vector<8x128xf32>
    %1088 = arith.addf %1084, %1087 : vector<8x128xf32>
    %1089 = math.tanh %1088 : vector<8x128xf32>
    %1090 = arith.index_cast %c77_i32 : i32 to index
    %1091 = memref.load %arg3[%1090] : memref<80xf32, #tpu.memory_space<smem>>
    %1092 = vector.broadcast %1091 : f32 to vector<8x128xf32>
    %1093 = arith.mulf %1089, %1092 : vector<8x128xf32>
    %1094 = arith.addf %1080, %1093 : vector<8x128xf32>
    %c78_i32 = arith.constant 78 : i32
    %1095 = arith.index_cast %c78_i32 : i32 to index
    %1096 = memref.load %arg1[%1095] : memref<80xf32, #tpu.memory_space<smem>>
    %1097 = vector.broadcast %1096 : f32 to vector<8x128xf32>
    %1098 = arith.mulf %0, %1097 : vector<8x128xf32>
    %1099 = arith.index_cast %c78_i32 : i32 to index
    %1100 = memref.load %arg2[%1099] : memref<80xf32, #tpu.memory_space<smem>>
    %1101 = vector.broadcast %1100 : f32 to vector<8x128xf32>
    %1102 = arith.addf %1098, %1101 : vector<8x128xf32>
    %1103 = math.tanh %1102 : vector<8x128xf32>
    %1104 = arith.index_cast %c78_i32 : i32 to index
    %1105 = memref.load %arg3[%1104] : memref<80xf32, #tpu.memory_space<smem>>
    %1106 = vector.broadcast %1105 : f32 to vector<8x128xf32>
    %1107 = arith.mulf %1103, %1106 : vector<8x128xf32>
    %1108 = arith.addf %1094, %1107 : vector<8x128xf32>
    %c79_i32 = arith.constant 79 : i32
    %1109 = arith.index_cast %c79_i32 : i32 to index
    %1110 = memref.load %arg1[%1109] : memref<80xf32, #tpu.memory_space<smem>>
    %1111 = vector.broadcast %1110 : f32 to vector<8x128xf32>
    %1112 = arith.mulf %0, %1111 : vector<8x128xf32>
    %1113 = arith.index_cast %c79_i32 : i32 to index
    %1114 = memref.load %arg2[%1113] : memref<80xf32, #tpu.memory_space<smem>>
    %1115 = vector.broadcast %1114 : f32 to vector<8x128xf32>
    %1116 = arith.addf %1112, %1115 : vector<8x128xf32>
    %1117 = math.tanh %1116 : vector<8x128xf32>
    %1118 = arith.index_cast %c79_i32 : i32 to index
    %1119 = memref.load %arg3[%1118] : memref<80xf32, #tpu.memory_space<smem>>
    %1120 = vector.broadcast %1119 : f32 to vector<8x128xf32>
    %1121 = arith.mulf %1117, %1120 : vector<8x128xf32>
    %1122 = arith.addf %1108, %1121 : vector<8x128xf32>
    %c80_i32 = arith.constant 80 : i32
    %c0_2 = arith.constant 0 : index
    %c0_3 = arith.constant 0 : index
    %1123 = vector.load %arg6[%c0_2, %c0_3] : memref<8x128xf32, #tpu.memory_space<vmem>>, vector<8x128xf32>
    tpu.vector_store %arg6[%c0_2, %c0_3], %1122 {strides = array<i32>} : memref<8x128xf32, #tpu.memory_space<vmem>>, vector<8x128xf32>,
    return
  }
  func.func @transform_0(%arg0: i32) -> i32 {
    %c0_i32 = arith.constant 0 : i32
    %c0_i32_0 = arith.constant 0 : i32
    return %c0_i32 : i32
  }
  func.func @transform_1(%arg0: i32) -> i32 {
    %c0_i32 = arith.constant 0 : i32
    %c0_i32_0 = arith.constant 0 : i32
    return %c0_i32 : i32
  }
  func.func @transform_2(%arg0: i32) -> i32 {
    %c0_i32 = arith.constant 0 : i32
    %c0_i32_0 = arith.constant 0 : i32
    return %c0_i32 : i32
  }
  func.func @transform_3(%arg0: i32) -> i32 {
    %c0_i32 = arith.constant 0 : i32
    %c0_i32_0 = arith.constant 0 : i32
    return %c0_i32 : i32
  }
  func.func @transform_4(%arg0: i32) -> (i32, i32) {
    %c0_i32 = arith.constant 0 : i32
    %c0_i32_0 = arith.constant 0 : i32
    return %arg0, %c0_i32 : i32, i32
  }
  func.func @transform_5(%arg0: i32) -> (i32, i32) {
    %c0_i32 = arith.constant 0 : i32
    %c0_i32_0 = arith.constant 0 : i32
    return %arg0, %c0_i32 : i32, i32
  }
}

</mosaic_0001>

<llo_original>
// kernel: tpu_custom_call.1
$region0: #{tpu_custom_call.1}
  #allocation0 [shape = 'u32[]', space=smem, size = 0x4, offset = 0x4, fixed_abs, tag = 'smem constant byte address 0x4 - core index']
  #allocation1 [shape = 'u32[144,128]{1,0:T(1,128)}', space=vmem, size = 0x12000, scoped, tag = 'internal scratch']
  #allocation2 [shape = 'f32[1]{0:T(128)S(6)}', space=smem, size = 0x200, scoped, tag = 'scoped memory for tpu_custom_call.1']
  %s0 = inlined_call_operand.vmem [shape: f32[80], index: 0, kind: input, shape index: {}]
  %s1 = inlined_call_operand.vmem [shape: f32[80], index: 1, kind: input, shape index: {}]
  %s2 = inlined_call_operand.vmem [shape: f32[80], index: 2, kind: input, shape index: {}]
  %s3 = inlined_call_operand.<no memory space> [shape: f32[1], index: 3, kind: input, shape index: {}]
  %s4 = inlined_call_operand.vmem [shape: f32[8,128], index: 4, kind: input, shape index: {}]
  %s5 = inlined_call_operand.hbm [shape: f32[8,128], index: 5, kind: output, shape index: {}]
  %s6 = sld [smem:[#allocation0]]
  $region42: #{tpu_custom_call.1} parent=0
    _
  %s8 = ssub.s32 1, %s6
  %s9 = scalar_select 0, %s8, %s6
  %10 = sst [smem:[#allocation2]] %s3
  $region1: #{tpu_custom_call.1} parent=0
    #allocation3 [shape = 'u8[512]{0}', space=smem, size = 0x200, scoped, tag = 'input window, operand 0, single buffered']
    #allocation4 [shape = 's32[1]{0}', space=sflag, size = 0x4, scoped, tag = 'scoped memory for tpu_custom_call.1']
    #allocation5 [shape = 's32[1]{0}', space=sflag, size = 0x4, scoped, tag = 'scoped memory for tpu_custom_call.1']
    #allocation6 [shape = 'u8[512]{0}', space=smem, size = 0x200, scoped, tag = 'input window, operand 1, single buffered']
    #allocation7 [shape = 's32[1]{0}', space=sflag, size = 0x4, scoped, tag = 'scoped memory for tpu_custom_call.1']
    #allocation8 [shape = 'u8[512]{0}', space=smem, size = 0x200, scoped, tag = 'input window, operand 2, single buffered']
    #allocation9 [shape = 'u8[4096]{0}', space=vmem, size = 0x1000, scoped, tag = 'output window, operand 0, single buffered']
    %11 = vsyncpa [#allocation5], 0
    %12 = vsyncpa [#allocation7], 0
    %13 = vsyncpa [#allocation4], 0
    // Predicated region
    $region2: #{tpu_custom_call.1} parent=1 // pred_check
      _
    $region3: #{tpu_custom_call.1} parent=1 // pred_check_branch
      %15 = sbr.rel (0) target = $region5
    $region4: #{tpu_custom_call.1} parent=1 // pred_region
      %s17 = ssub.s32 16, 16
      %18 = vsyncadd [#allocation5], %s17
      %s20 = sshll.u32 %s0, 4
      %s21 = int_to_ptr.vmem [resolvable:$true] %s20
      %23 = dma.vmem_to_smem %s21, 16, [#allocation3], [#allocation5]
    $region5: #{tpu_custom_call.1} parent=1 // pred_fallthru
      _
    // Predicated region
    $region6: #{tpu_custom_call.1} parent=1 // pred_check
      _
    $region7: #{tpu_custom_call.1} parent=1 // pred_check_branch
      %25 = sbr.rel (0) target = $region9
    $region8: #{tpu_custom_call.1} parent=1 // pred_region
      %s27 = ssub.s32 16, 16
      %28 = vsyncadd [#allocation7], %s27
      %s30 = sshll.u32 %s1, 4
      %s31 = int_to_ptr.vmem [resolvable:$true] %s30
      %33 = dma.vmem_to_smem %s31, 16, [#allocation6], [#allocation7]
    $region9: #{tpu_custom_call.1} parent=1 // pred_fallthru
      _
    // Predicated region
    $region10: #{tpu_custom_call.1} parent=1 // pred_check
      _
    $region11: #{tpu_custom_call.1} parent=1 // pred_check_branch
      %35 = sbr.rel (0) target = $region13
    $region12: #{tpu_custom_call.1} parent=1 // pred_region
      %s37 = ssub.s32 16, 16
      %38 = vsyncadd [#allocation7], %s37
      %s40 = sshll.u32 %s2, 4
      %s41 = int_to_ptr.vmem [resolvable:$true] %s40
      %43 = dma.vmem_to_smem %s41, 16, [#allocation8], [#allocation7]
    $region13: #{tpu_custom_call.1} parent=1 // pred_fallthru
      _
    // Predicated region
    $region14: #{tpu_custom_call.1} parent=1 // pred_check
      _
    $region15: #{tpu_custom_call.1} parent=1 // pred_check_branch
      %45 = sbr.rel (0) target = $region17
    $region16: #{tpu_custom_call.1} parent=1 // pred_region
      _
    $region17: #{tpu_custom_call.1} parent=1 // pred_fallthru
      _
    // Predicated region
    $region18: #{tpu_custom_call.1} parent=1 // pred_check
      _
    $region19: #{tpu_custom_call.1} parent=1 // pred_check_branch
      %47 = sbr.rel (0) target = $region21
    $region20: #{tpu_custom_call.1} parent=1 // pred_region
      _
    $region21: #{tpu_custom_call.1} parent=1 // pred_fallthru
      _
    // Predicated region
    $region22: #{tpu_custom_call.1} parent=1 // pred_check
      _
    $region23: #{tpu_custom_call.1} parent=1 // pred_check_branch
      %49 = sbr.rel (0) target = $region25
    $region24: #{tpu_custom_call.1} parent=1 // pred_region
      %50 = dma.done [#allocation5], 16
    $region25: #{tpu_custom_call.1} parent=1 // pred_fallthru
      _
    // Predicated region
    $region26: #{tpu_custom_call.1} parent=1 // pred_check
      _
    $region27: #{tpu_custom_call.1} parent=1 // pred_check_branch
      %52 = sbr.rel (0) target = $region29
    $region28: #{tpu_custom_call.1} parent=1 // pred_region
      %53 = dma.done [#allocation7], 16
    $region29: #{tpu_custom_call.1} parent=1 // pred_fallthru
      _
    // Predicated region
    $region30: #{tpu_custom_call.1} parent=1 // pred_check
      _
    $region31: #{tpu_custom_call.1} parent=1 // pred_check_branch
      %55 = sbr.rel (0) target = $region33
    $region32: #{tpu_custom_call.1} parent=1 // pred_region
      %56 = dma.done [#allocation7], 16
    $region33: #{tpu_custom_call.1} parent=1 // pred_fallthru
      _
    %57 = sfence
    %v58 = vld [vmem:[%s4] sm:$0xff]
    %s59 = sld [smem:[#allocation2]]
    %v60 = vstv %s59
    %s61 = sld [smem:[#allocation3]]
    %v62 = vstv %s61
    %v63 = vmul.f32 %v58, %v62
    %s64 = sld [smem:[#allocation6]]
    %v65 = vstv %s64
    %v66 = vadd.f32 %v63, %v65
    %v67 = vtanh.pop %v66
    %s68 = sld [smem:[#allocation8]]
    %v69 = vstv %s68
    %v70 = vmul.f32 %v67, %v69
    %v71 = vadd.f32 %v60, %v70
    %s72 = sld [smem:[#allocation3 + $0x1]]
    %v73 = vstv %s72
    %v74 = vmul.f32 %v58, %v73
    %s75 = sld [smem:[#allocation6 + $0x1]]
    %v76 = vstv %s75
    %v77 = vadd.f32 %v74, %v76
    %v78 = vtanh.pop %v77
    %s79 = sld [smem:[#allocation8 + $0x1]]
    %v80 = vstv %s79
    %v81 = vmul.f32 %v78, %v80
    %v82 = vadd.f32 %v71, %v81
    %s83 = sld [smem:[#allocation3 + $0x2]]
    %v84 = vstv %s83
    %v85 = vmul.f32 %v58, %v84
    %s86 = sld [smem:[#allocation6 + $0x2]]
    %v87 = vstv %s86
    %v88 = vadd.f32 %v85, %v87
    %v89 = vtanh.pop %v88
    %s90 = sld [smem:[#allocation8 + $0x2]]
    %v91 = vstv %s90
    %v92 = vmul.f32 %v89, %v91
    %v93 = vadd.f32 %v82, %v92
    %s94 = sld [smem:[#allocation3 + $0x3]]
    %v95 = vstv %s94
    %v96 = vmul.f32 %v58, %v95
    %s97 = sld [smem:[#allocation6 + $0x3]]
    %v98 = vstv %s97
    %v99 = vadd.f32 %v96, %v98
    %v100 = vtanh.pop %v99
    %s101 = sld [smem:[#allocation8 + $0x3]]
    %v102 = vstv %s101
    %v103 = vmul.f32 %v100, %v102
    %v104 = vadd.f32 %v93, %v103
    %s105 = sld [smem:[#allocation3 + $0x4]]
    %v106 = vstv %s105
    %v107 = vmul.f32 %v58, %v106
    %s108 = sld [smem:[#allocation6 + $0x4]]
    %v109 = vstv %s108
    %v110 = vadd.f32 %v107, %v109
    %v111 = vtanh.pop %v110
    %s112 = sld [smem:[#allocation8 + $0x4]]
    %v113 = vstv %s112
    %v114 = vmul.f32 %v111, %v113
    %v115 = vadd.f32 %v104, %v114
    %s116 = sld [smem:[#allocation3 + $0x5]]
    %v117 = vstv %s116
    %v118 = vmul.f32 %v58, %v117
    %s119 = sld [smem:[#allocation6 + $0x5]]
    %v120 = vstv %s119
    %v121 = vadd.f32 %v118, %v120
    %v122 = vtanh.pop %v121
    %s123 = sld [smem:[#allocation8 + $0x5]]
    %v124 = vstv %s123
    %v125 = vmul.f32 %v122, %v124
    %v126 = vadd.f32 %v115, %v125
    %s127 = sld [smem:[#allocation3 + $0x6]]
    %v128 = vstv %s127
    %v129 = vmul.f32 %v58, %v128
    %s130 = sld [smem:[#allocation6 + $0x6]]
    %v131 = vstv %s130
    %v132 = vadd.f32 %v129, %v131
    %v133 = vtanh.pop %v132
    %s134 = sld [smem:[#allocation8 + $0x6]]
    %v135 = vstv %s134
    %v136 = vmul.f32 %v133, %v135
    %v137 = vadd.f32 %v126, %v136
    %s138 = sld [smem:[#allocation3 + $0x7]]
    %v139 = vstv %s138
    %v140 = vmul.f32 %v58, %v139
    %s141 = sld [smem:[#allocation6 + $0x7]]
    %v142 = vstv %s141
    %v143 = vadd.f32 %v140, %v142
    %v144 = vtanh.pop %v143
    %s145 = sld [smem:[#allocation8 + $0x7]]
    %v146 = vstv %s145
    %v147 = vmul.f32 %v144, %v146
    %v148 = vadd.f32 %v137, %v147
    %s149 = sld [smem:[#allocation3 + $0x8]]
    %v150 = vstv %s149
    %v151 = vmul.f32 %v58, %v150
    %s152 = sld [smem:[#allocation6 + $0x8]]
    %v153 = vstv %s152
    %v154 = vadd.f32 %v151, %v153
    %v155 = vtanh.pop %v154
    %s156 = sld [smem:[#allocation8 + $0x8]]
    %v157 = vstv %s156
    %v158 = vmul.f32 %v155, %v157
    %v159 = vadd.f32 %v148, %v158
    %s160 = sld [smem:[#allocation3 + $0x9]]
    %v161 = vstv %s160
    %v162 = vmul.f32 %v58, %v161
    %s163 = sld [smem:[#allocation6 + $0x9]]
    %v164 = vstv %s163
    %v165 = vadd.f32 %v162, %v164
    %v166 = vtanh.pop %v165
    %s167 = sld [smem:[#allocation8 + $0x9]]
    %v168 = vstv %s167
    %v169 = vmul.f32 %v166, %v168
    %v170 = vadd.f32 %v159, %v169
    %s171 = sld [smem:[#allocation3 + $0xa]]
    %v172 = vstv %s171
    %v173 = vmul.f32 %v58, %v172
    %s174 = sld [smem:[#allocation6 + $0xa]]
    %v175 = vstv %s174
    %v176 = vadd.f32 %v173, %v175
    %v177 = vtanh.pop %v176
    %s178 = sld [smem:[#allocation8 + $0xa]]
    %v179 = vstv %s178
    %v180 = vmul.f32 %v177, %v179
    %v181 = vadd.f32 %v170, %v180
    %s182 = sld [smem:[#allocation3 + $0xb]]
    %v183 = vstv %s182
    %v184 = vmul.f32 %v58, %v183
    %s185 = sld [smem:[#allocation6 + $0xb]]
    %v186 = vstv %s185
    %v187 = vadd.f32 %v184, %v186
    %v188 = vtanh.pop %v187
    %s189 = sld [smem:[#allocation8 + $0xb]]
    %v190 = vstv %s189
    %v191 = vmul.f32 %v188, %v190
    %v192 = vadd.f32 %v181, %v191
    %s193 = sld [smem:[#allocation3 + $0xc]]
    %v194 = vstv %s193
    %v195 = vmul.f32 %v58, %v194
    %s196 = sld [smem:[#allocation6 + $0xc]]
    %v197 = vstv %s196
    %v198 = vadd.f32 %v195, %v197
    %v199 = vtanh.pop %v198
    %s200 = sld [smem:[#allocation8 + $0xc]]
    %v201 = vstv %s200
    %v202 = vmul.f32 %v199, %v201
    %v203 = vadd.f32 %v192, %v202
    %s204 = sld [smem:[#allocation3 + $0xd]]
    %v205 = vstv %s204
    %v206 = vmul.f32 %v58, %v205
    %s207 = sld [smem:[#allocation6 + $0xd]]
    %v208 = vstv %s207
    %v209 = vadd.f32 %v206, %v208
    %v210 = vtanh.pop %v209
    %s211 = sld [smem:[#allocation8 + $0xd]]
    %v212 = vstv %s211
    %v213 = vmul.f32 %v210, %v212
    %v214 = vadd.f32 %v203, %v213
    %s215 = sld [smem:[#allocation3 + $0xe]]
    %v216 = vstv %s215
    %v217 = vmul.f32 %v58, %v216
    %s218 = sld [smem:[#allocation6 + $0xe]]
    %v219 = vstv %s218
    %v220 = vadd.f32 %v217, %v219
    %v221 = vtanh.pop %v220
    %s222 = sld [smem:[#allocation8 + $0xe]]
    %v223 = vstv %s222
    %v224 = vmul.f32 %v221, %v223
    %v225 = vadd.f32 %v214, %v224
    %s226 = sld [smem:[#allocation3 + $0xf]]
    %v227 = vstv %s226
    %v228 = vmul.f32 %v58, %v227
    %s229 = sld [smem:[#allocation6 + $0xf]]
    %v230 = vstv %s229
    %v231 = vadd.f32 %v228, %v230
    %v232 = vtanh.pop %v231
    %s233 = sld [smem:[#allocation8 + $0xf]]
    %v234 = vstv %s233
    %v235 = vmul.f32 %v232, %v234
    %v236 = vadd.f32 %v225, %v235
    %s237 = sld [smem:[#allocation3 + $0x10]]
    %v238 = vstv %s237
    %v239 = vmul.f32 %v58, %v238
    %s240 = sld [smem:[#allocation6 + $0x10]]
    %v241 = vstv %s240
    %v242 = vadd.f32 %v239, %v241
    %v243 = vtanh.pop %v242
    %s244 = sld [smem:[#allocation8 + $0x10]]
    %v245 = vstv %s244
    %v246 = vmul.f32 %v243, %v245
    %v247 = vadd.f32 %v236, %v246
    %s248 = sld [smem:[#allocation3 + $0x11]]
    %v249 = vstv %s248
    %v250 = vmul.f32 %v58, %v249
    %s251 = sld [smem:[#allocation6 + $0x11]]
    %v252 = vstv %s251
    %v253 = vadd.f32 %v250, %v252
    %v254 = vtanh.pop %v253
    %s255 = sld [smem:[#allocation8 + $0x11]]
    %v256 = vstv %s255
    %v257 = vmul.f32 %v254, %v256
    %v258 = vadd.f32 %v247, %v257
    %s259 = sld [smem:[#allocation3 + $0x12]]
    %v260 = vstv %s259
    %v261 = vmul.f32 %v58, %v260
    %s262 = sld [smem:[#allocation6 + $0x12]]
    %v263 = vstv %s262
    %v264 = vadd.f32 %v261, %v263
    %v265 = vtanh.pop %v264
    %s266 = sld [smem:[#allocation8 + $0x12]]
    %v267 = vstv %s266
    %v268 = vmul.f32 %v265, %v267
    %v269 = vadd.f32 %v258, %v268
    %s270 = sld [smem:[#allocation3 + $0x13]]
    %v271 = vstv %s270
    %v272 = vmul.f32 %v58, %v271
    %s273 = sld [smem:[#allocation6 + $0x13]]
    %v274 = vstv %s273
    %v275 = vadd.f32 %v272, %v274
    %v276 = vtanh.pop %v275
    %s277 = sld [smem:[#allocation8 + $0x13]]
    %v278 = vstv %s277
    %v279 = vmul.f32 %v276, %v278
    %v280 = vadd.f32 %v269, %v279
    %s281 = sld [smem:[#allocation3 + $0x14]]
    %v282 = vstv %s281
    %v283 = vmul.f32 %v58, %v282
    %s284 = sld [smem:[#allocation6 + $0x14]]
    %v285 = vstv %s284
    %v286 = vadd.f32 %v283, %v285
    %v287 = vtanh.pop %v286
    %s288 = sld [smem:[#allocation8 + $0x14]]
    %v289 = vstv %s288
    %v290 = vmul.f32 %v287, %v289
    %v291 = vadd.f32 %v280, %v290
    %s292 = sld [smem:[#allocation3 + $0x15]]
    %v293 = vstv %s292
    %v294 = vmul.f32 %v58, %v293
    %s295 = sld [smem:[#allocation6 + $0x15]]
    %v296 = vstv %s295
    %v297 = vadd.f32 %v294, %v296
    %v298 = vtanh.pop %v297
    %s299 = sld [smem:[#allocation8 + $0x15]]
    %v300 = vstv %s299
    %v301 = vmul.f32 %v298, %v300
    %v302 = vadd.f32 %v291, %v301
    %s303 = sld [smem:[#allocation3 + $0x16]]
    %v304 = vstv %s303
    %v305 = vmul.f32 %v58, %v304
    %s306 = sld [smem:[#allocation6 + $0x16]]
    %v307 = vstv %s306
    %v308 = vadd.f32 %v305, %v307
    %v309 = vtanh.pop %v308
    %s310 = sld [smem:[#allocation8 + $0x16]]
    %v311 = vstv %s310
    %v312 = vmul.f32 %v309, %v311
    %v313 = vadd.f32 %v302, %v312
    %s314 = sld [smem:[#allocation3 + $0x17]]
    %v315 = vstv %s314
    %v316 = vmul.f32 %v58, %v315
    %s317 = sld [smem:[#allocation6 + $0x17]]
    %v318 = vstv %s317
    %v319 = vadd.f32 %v316, %v318
    %v320 = vtanh.pop %v319
    %s321 = sld [smem:[#allocation8 + $0x17]]
    %v322 = vstv %s321
    %v323 = vmul.f32 %v320, %v322
    %v324 = vadd.f32 %v313, %v323
    %s325 = sld [smem:[#allocation3 + $0x18]]
    %v326 = vstv %s325
    %v327 = vmul.f32 %v58, %v326
    %s328 = sld [smem:[#allocation6 + $0x18]]
    %v329 = vstv %s328
    %v330 = vadd.f32 %v327, %v329
    %v331 = vtanh.pop %v330
    %s332 = sld [smem:[#allocation8 + $0x18]]
    %v333 = vstv %s332
    %v334 = vmul.f32 %v331, %v333
    %v335 = vadd.f32 %v324, %v334
    %s336 = sld [smem:[#allocation3 + $0x19]]
    %v337 = vstv %s336
    %v338 = vmul.f32 %v58, %v337
    %s339 = sld [smem:[#allocation6 + $0x19]]
    %v340 = vstv %s339
    %v341 = vadd.f32 %v338, %v340
    %v342 = vtanh.pop %v341
    %s343 = sld [smem:[#allocation8 + $0x19]]
    %v344 = vstv %s343
    %v345 = vmul.f32 %v342, %v344
    %v346 = vadd.f32 %v335, %v345
    %s347 = sld [smem:[#allocation3 + $0x1a]]
    %v348 = vstv %s347
    %v349 = vmul.f32 %v58, %v348
    %s350 = sld [smem:[#allocation6 + $0x1a]]
    %v351 = vstv %s350
    %v352 = vadd.f32 %v349, %v351
    %v353 = vtanh.pop %v352
    %s354 = sld [smem:[#allocation8 + $0x1a]]
    %v355 = vstv %s354
    %v356 = vmul.f32 %v353, %v355
    %v357 = vadd.f32 %v346, %v356
    %s358 = sld [smem:[#allocation3 + $0x1b]]
    %v359 = vstv %s358
    %v360 = vmul.f32 %v58, %v359
    %s361 = sld [smem:[#allocation6 + $0x1b]]
    %v362 = vstv %s361
    %v363 = vadd.f32 %v360, %v362
    %v364 = vtanh.pop %v363
    %s365 = sld [smem:[#allocation8 + $0x1b]]
    %v366 = vstv %s365
    %v367 = vmul.f32 %v364, %v366
    %v368 = vadd.f32 %v357, %v367
    %s369 = sld [smem:[#allocation3 + $0x1c]]
    %v370 = vstv %s369
    %v371 = vmul.f32 %v58, %v370
    %s372 = sld [smem:[#allocation6 + $0x1c]]
    %v373 = vstv %s372
    %v374 = vadd.f32 %v371, %v373
    %v375 = vtanh.pop %v374
    %s376 = sld [smem:[#allocation8 + $0x1c]]
    %v377 = vstv %s376
    %v378 = vmul.f32 %v375, %v377
    %v379 = vadd.f32 %v368, %v378
    %s380 = sld [smem:[#allocation3 + $0x1d]]
    %v381 = vstv %s380
    %v382 = vmul.f32 %v58, %v381
    %s383 = sld [smem:[#allocation6 + $0x1d]]
    %v384 = vstv %s383
    %v385 = vadd.f32 %v382, %v384
    %v386 = vtanh.pop %v385
    %s387 = sld [smem:[#allocation8 + $0x1d]]
    %v388 = vstv %s387
    %v389 = vmul.f32 %v386, %v388
    %v390 = vadd.f32 %v379, %v389
    %s391 = sld [smem:[#allocation3 + $0x1e]]
    %v392 = vstv %s391
    %v393 = vmul.f32 %v58, %v392
    %s394 = sld [smem:[#allocation6 + $0x1e]]
    %v395 = vstv %s394
    %v396 = vadd.f32 %v393, %v395
    %v397 = vtanh.pop %v396
    %s398 = sld [smem:[#allocation8 + $0x1e]]
    %v399 = vstv %s398
    %v400 = vmul.f32 %v397, %v399
    %v401 = vadd.f32 %v390, %v400
    %s402 = sld [smem:[#allocation3 + $0x1f]]
    %v403 = vstv %s402
    %v404 = vmul.f32 %v58, %v403
    %s405 = sld [smem:[#allocation6 + $0x1f]]
    %v406 = vstv %s405
    %v407 = vadd.f32 %v404, %v406
    %v408 = vtanh.pop %v407
    %s409 = sld [smem:[#allocation8 + $0x1f]]
    %v410 = vstv %s409
    %v411 = vmul.f32 %v408, %v410
    %v412 = vadd.f32 %v401, %v411
    %s413 = sld [smem:[#allocation3 + $0x20]]
    %v414 = vstv %s413
    %v415 = vmul.f32 %v58, %v414
    %s416 = sld [smem:[#allocation6 + $0x20]]
    %v417 = vstv %s416
    %v418 = vadd.f32 %v415, %v417
    %v419 = vtanh.pop %v418
    %s420 = sld [smem:[#allocation8 + $0x20]]
    %v421 = vstv %s420
    %v422 = vmul.f32 %v419, %v421
    %v423 = vadd.f32 %v412, %v422
    %s424 = sld [smem:[#allocation3 + $0x21]]
    %v425 = vstv %s424
    %v426 = vmul.f32 %v58, %v425
    %s427 = sld [smem:[#allocation6 + $0x21]]
    %v428 = vstv %s427
    %v429 = vadd.f32 %v426, %v428
    %v430 = vtanh.pop %v429
    %s431 = sld [smem:[#allocation8 + $0x21]]
    %v432 = vstv %s431
    %v433 = vmul.f32 %v430, %v432
    %v434 = vadd.f32 %v423, %v433
    %s435 = sld [smem:[#allocation3 + $0x22]]
    %v436 = vstv %s435
    %v437 = vmul.f32 %v58, %v436
    %s438 = sld [smem:[#allocation6 + $0x22]]
    %v439 = vstv %s438
    %v440 = vadd.f32 %v437, %v439
    %v441 = vtanh.pop %v440
    %s442 = sld [smem:[#allocation8 + $0x22]]
    %v443 = vstv %s442
    %v444 = vmul.f32 %v441, %v443
    %v445 = vadd.f32 %v434, %v444
    %s446 = sld [smem:[#allocation3 + $0x23]]
    %v447 = vstv %s446
    %v448 = vmul.f32 %v58, %v447
    %s449 = sld [smem:[#allocation6 + $0x23]]
    %v450 = vstv %s449
    %v451 = vadd.f32 %v448, %v450
    %v452 = vtanh.pop %v451
    %s453 = sld [smem:[#allocation8 + $0x23]]
    %v454 = vstv %s453
    %v455 = vmul.f32 %v452, %v454
    %v456 = vadd.f32 %v445, %v455
    %s457 = sld [smem:[#allocation3 + $0x24]]
    %v458 = vstv %s457
    %v459 = vmul.f32 %v58, %v458
    %s460 = sld [smem:[#allocation6 + $0x24]]
    %v461 = vstv %s460
    %v462 = vadd.f32 %v459, %v461
    %v463 = vtanh.pop %v462
    %s464 = sld [smem:[#allocation8 + $0x24]]
    %v465 = vstv %s464
    %v466 = vmul.f32 %v463, %v465
    %v467 = vadd.f32 %v456, %v466
    %s468 = sld [smem:[#allocation3 + $0x25]]
    %v469 = vstv %s468
    %v470 = vmul.f32 %v58, %v469
    %s471 = sld [smem:[#allocation6 + $0x25]]
    %v472 = vstv %s471
    %v473 = vadd.f32 %v470, %v472
    %v474 = vtanh.pop %v473
    %s475 = sld [smem:[#allocation8 + $0x25]]
    %v476 = vstv %s475
    %v477 = vmul.f32 %v474, %v476
    %v478 = vadd.f32 %v467, %v477
    %s479 = sld [smem:[#allocation3 + $0x26]]
    %v480 = vstv %s479
    %v481 = vmul.f32 %v58, %v480
    %s482 = sld [smem:[#allocation6 + $0x26]]
    %v483 = vstv %s482
    %v484 = vadd.f32 %v481, %v483
    %v485 = vtanh.pop %v484
    %s486 = sld [smem:[#allocation8 + $0x26]]
    %v487 = vstv %s486
    %v488 = vmul.f32 %v485, %v487
    %v489 = vadd.f32 %v478, %v488
    %s490 = sld [smem:[#allocation3 + $0x27]]
    %v491 = vstv %s490
    %v492 = vmul.f32 %v58, %v491
    %s493 = sld [smem:[#allocation6 + $0x27]]
    %v494 = vstv %s493
    %v495 = vadd.f32 %v492, %v494
    %v496 = vtanh.pop %v495
    %s497 = sld [smem:[#allocation8 + $0x27]]
    %v498 = vstv %s497
    %v499 = vmul.f32 %v496, %v498
    %v500 = vadd.f32 %v489, %v499
    %s501 = sld [smem:[#allocation3 + $0x28]]
    %v502 = vstv %s501
    %v503 = vmul.f32 %v58, %v502
    %s504 = sld [smem:[#allocation6 + $0x28]]
    %v505 = vstv %s504
    %v506 = vadd.f32 %v503, %v505
    %v507 = vtanh.pop %v506
    %s508 = sld [smem:[#allocation8 + $0x28]]
    %v509 = vstv %s508
    %v510 = vmul.f32 %v507, %v509
    %v511 = vadd.f32 %v500, %v510
    %s512 = sld [smem:[#allocation3 + $0x29]]
    %v513 = vstv %s512
    %v514 = vmul.f32 %v58, %v513
    %s515 = sld [smem:[#allocation6 + $0x29]]
    %v516 = vstv %s515
    %v517 = vadd.f32 %v514, %v516
    %v518 = vtanh.pop %v517
    %s519 = sld [smem:[#allocation8 + $0x29]]
    %v520 = vstv %s519
    %v521 = vmul.f32 %v518, %v520
    %v522 = vadd.f32 %v511, %v521
    %s523 = sld [smem:[#allocation3 + $0x2a]]
    %v524 = vstv %s523
    %v525 = vmul.f32 %v58, %v524
    %s526 = sld [smem:[#allocation6 + $0x2a]]
    %v527 = vstv %s526
    %v528 = vadd.f32 %v525, %v527
    %v529 = vtanh.pop %v528
    %s530 = sld [smem:[#allocation8 + $0x2a]]
    %v531 = vstv %s530
    %v532 = vmul.f32 %v529, %v531
    %v533 = vadd.f32 %v522, %v532
    %s534 = sld [smem:[#allocation3 + $0x2b]]
    %v535 = vstv %s534
    %v536 = vmul.f32 %v58, %v535
    %s537 = sld [smem:[#allocation6 + $0x2b]]
    %v538 = vstv %s537
    %v539 = vadd.f32 %v536, %v538
    %v540 = vtanh.pop %v539
    %s541 = sld [smem:[#allocation8 + $0x2b]]
    %v542 = vstv %s541
    %v543 = vmul.f32 %v540, %v542
    %v544 = vadd.f32 %v533, %v543
    %s545 = sld [smem:[#allocation3 + $0x2c]]
    %v546 = vstv %s545
    %v547 = vmul.f32 %v58, %v546
    %s548 = sld [smem:[#allocation6 + $0x2c]]
    %v549 = vstv %s548
    %v550 = vadd.f32 %v547, %v549
    %v551 = vtanh.pop %v550
    %s552 = sld [smem:[#allocation8 + $0x2c]]
    %v553 = vstv %s552
    %v554 = vmul.f32 %v551, %v553
    %v555 = vadd.f32 %v544, %v554
    %s556 = sld [smem:[#allocation3 + $0x2d]]
    %v557 = vstv %s556
    %v558 = vmul.f32 %v58, %v557
    %s559 = sld [smem:[#allocation6 + $0x2d]]
    %v560 = vstv %s559
    %v561 = vadd.f32 %v558, %v560
    %v562 = vtanh.pop %v561
    %s563 = sld [smem:[#allocation8 + $0x2d]]
    %v564 = vstv %s563
    %v565 = vmul.f32 %v562, %v564
    %v566 = vadd.f32 %v555, %v565
    %s567 = sld [smem:[#allocation3 + $0x2e]]
    %v568 = vstv %s567
    %v569 = vmul.f32 %v58, %v568
    %s570 = sld [smem:[#allocation6 + $0x2e]]
    %v571 = vstv %s570
    %v572 = vadd.f32 %v569, %v571
    %v573 = vtanh.pop %v572
    %s574 = sld [smem:[#allocation8 + $0x2e]]
    %v575 = vstv %s574
    %v576 = vmul.f32 %v573, %v575
    %v577 = vadd.f32 %v566, %v576
    %s578 = sld [smem:[#allocation3 + $0x2f]]
    %v579 = vstv %s578
    %v580 = vmul.f32 %v58, %v579
    %s581 = sld [smem:[#allocation6 + $0x2f]]
    %v582 = vstv %s581
    %v583 = vadd.f32 %v580, %v582
    %v584 = vtanh.pop %v583
    %s585 = sld [smem:[#allocation8 + $0x2f]]
    %v586 = vstv %s585
    %v587 = vmul.f32 %v584, %v586
    %v588 = vadd.f32 %v577, %v587
    %s589 = sld [smem:[#allocation3 + $0x30]]
    %v590 = vstv %s589
    %v591 = vmul.f32 %v58, %v590
    %s592 = sld [smem:[#allocation6 + $0x30]]
    %v593 = vstv %s592
    %v594 = vadd.f32 %v591, %v593
    %v595 = vtanh.pop %v594
    %s596 = sld [smem:[#allocation8 + $0x30]]
    %v597 = vstv %s596
    %v598 = vmul.f32 %v595, %v597
    %v599 = vadd.f32 %v588, %v598
    %s600 = sld [smem:[#allocation3 + $0x31]]
    %v601 = vstv %s600
    %v602 = vmul.f32 %v58, %v601
    %s603 = sld [smem:[#allocation6 + $0x31]]
    %v604 = vstv %s603
    %v605 = vadd.f32 %v602, %v604
    %v606 = vtanh.pop %v605
    %s607 = sld [smem:[#allocation8 + $0x31]]
    %v608 = vstv %s607
    %v609 = vmul.f32 %v606, %v608
    %v610 = vadd.f32 %v599, %v609
    %s611 = sld [smem:[#allocation3 + $0x32]]
    %v612 = vstv %s611
    %v613 = vmul.f32 %v58, %v612
    %s614 = sld [smem:[#allocation6 + $0x32]]
    %v615 = vstv %s614
    %v616 = vadd.f32 %v613, %v615
    %v617 = vtanh.pop %v616
    %s618 = sld [smem:[#allocation8 + $0x32]]
    %v619 = vstv %s618
    %v620 = vmul.f32 %v617, %v619
    %v621 = vadd.f32 %v610, %v620
    %s622 = sld [smem:[#allocation3 + $0x33]]
    %v623 = vstv %s622
    %v624 = vmul.f32 %v58, %v623
    %s625 = sld [smem:[#allocation6 + $0x33]]
    %v626 = vstv %s625
    %v627 = vadd.f32 %v624, %v626
    %v628 = vtanh.pop %v627
    %s629 = sld [smem:[#allocation8 + $0x33]]
    %v630 = vstv %s629
    %v631 = vmul.f32 %v628, %v630
    %v632 = vadd.f32 %v621, %v631
    %s633 = sld [smem:[#allocation3 + $0x34]]
    %v634 = vstv %s633
    %v635 = vmul.f32 %v58, %v634
    %s636 = sld [smem:[#allocation6 + $0x34]]
    %v637 = vstv %s636
    %v638 = vadd.f32 %v635, %v637
    %v639 = vtanh.pop %v638
    %s640 = sld [smem:[#allocation8 + $0x34]]
    %v641 = vstv %s640
    %v642 = vmul.f32 %v639, %v641
    %v643 = vadd.f32 %v632, %v642
    %s644 = sld [smem:[#allocation3 + $0x35]]
    %v645 = vstv %s644
    %v646 = vmul.f32 %v58, %v645
    %s647 = sld [smem:[#allocation6 + $0x35]]
    %v648 = vstv %s647
    %v649 = vadd.f32 %v646, %v648
    %v650 = vtanh.pop %v649
    %s651 = sld [smem:[#allocation8 + $0x35]]
    %v652 = vstv %s651
    %v653 = vmul.f32 %v650, %v652
    %v654 = vadd.f32 %v643, %v653
    %s655 = sld [smem:[#allocation3 + $0x36]]
    %v656 = vstv %s655
    %v657 = vmul.f32 %v58, %v656
    %s658 = sld [smem:[#allocation6 + $0x36]]
    %v659 = vstv %s658
    %v660 = vadd.f32 %v657, %v659
    %v661 = vtanh.pop %v660
    %s662 = sld [smem:[#allocation8 + $0x36]]
    %v663 = vstv %s662
    %v664 = vmul.f32 %v661, %v663
    %v665 = vadd.f32 %v654, %v664
    %s666 = sld [smem:[#allocation3 + $0x37]]
    %v667 = vstv %s666
    %v668 = vmul.f32 %v58, %v667
    %s669 = sld [smem:[#allocation6 + $0x37]]
    %v670 = vstv %s669
    %v671 = vadd.f32 %v668, %v670
    %v672 = vtanh.pop %v671
    %s673 = sld [smem:[#allocation8 + $0x37]]
    %v674 = vstv %s673
    %v675 = vmul.f32 %v672, %v674
    %v676 = vadd.f32 %v665, %v675
    %s677 = sld [smem:[#allocation3 + $0x38]]
    %v678 = vstv %s677
    %v679 = vmul.f32 %v58, %v678
    %s680 = sld [smem:[#allocation6 + $0x38]]
    %v681 = vstv %s680
    %v682 = vadd.f32 %v679, %v681
    %v683 = vtanh.pop %v682
    %s684 = sld [smem:[#allocation8 + $0x38]]
    %v685 = vstv %s684
    %v686 = vmul.f32 %v683, %v685
    %v687 = vadd.f32 %v676, %v686
    %s688 = sld [smem:[#allocation3 + $0x39]]
    %v689 = vstv %s688
    %v690 = vmul.f32 %v58, %v689
    %s691 = sld [smem:[#allocation6 + $0x39]]
    %v692 = vstv %s691
    %v693 = vadd.f32 %v690, %v692
    %v694 = vtanh.pop %v693
    %s695 = sld [smem:[#allocation8 + $0x39]]
    %v696 = vstv %s695
    %v697 = vmul.f32 %v694, %v696
    %v698 = vadd.f32 %v687, %v697
    %s699 = sld [smem:[#allocation3 + $0x3a]]
    %v700 = vstv %s699
    %v701 = vmul.f32 %v58, %v700
    %s702 = sld [smem:[#allocation6 + $0x3a]]
    %v703 = vstv %s702
    %v704 = vadd.f32 %v701, %v703
    %v705 = vtanh.pop %v704
    %s706 = sld [smem:[#allocation8 + $0x3a]]
    %v707 = vstv %s706
    %v708 = vmul.f32 %v705, %v707
    %v709 = vadd.f32 %v698, %v708
    %s710 = sld [smem:[#allocation3 + $0x3b]]
    %v711 = vstv %s710
    %v712 = vmul.f32 %v58, %v711
    %s713 = sld [smem:[#allocation6 + $0x3b]]
    %v714 = vstv %s713
    %v715 = vadd.f32 %v712, %v714
    %v716 = vtanh.pop %v715
    %s717 = sld [smem:[#allocation8 + $0x3b]]
    %v718 = vstv %s717
    %v719 = vmul.f32 %v716, %v718
    %v720 = vadd.f32 %v709, %v719
    %s721 = sld [smem:[#allocation3 + $0x3c]]
    %v722 = vstv %s721
    %v723 = vmul.f32 %v58, %v722
    %s724 = sld [smem:[#allocation6 + $0x3c]]
    %v725 = vstv %s724
    %v726 = vadd.f32 %v723, %v725
    %v727 = vtanh.pop %v726
    %s728 = sld [smem:[#allocation8 + $0x3c]]
    %v729 = vstv %s728
    %v730 = vmul.f32 %v727, %v729
    %v731 = vadd.f32 %v720, %v730
    %s732 = sld [smem:[#allocation3 + $0x3d]]
    %v733 = vstv %s732
    %v734 = vmul.f32 %v58, %v733
    %s735 = sld [smem:[#allocation6 + $0x3d]]
    %v736 = vstv %s735
    %v737 = vadd.f32 %v734, %v736
    %v738 = vtanh.pop %v737
    %s739 = sld [smem:[#allocation8 + $0x3d]]
    %v740 = vstv %s739
    %v741 = vmul.f32 %v738, %v740
    %v742 = vadd.f32 %v731, %v741
    %s743 = sld [smem:[#allocation3 + $0x3e]]
    %v744 = vstv %s743
    %v745 = vmul.f32 %v58, %v744
    %s746 = sld [smem:[#allocation6 + $0x3e]]
    %v747 = vstv %s746
    %v748 = vadd.f32 %v745, %v747
    %v749 = vtanh.pop %v748
    %s750 = sld [smem:[#allocation8 + $0x3e]]
    %v751 = vstv %s750
    %v752 = vmul.f32 %v749, %v751
    %v753 = vadd.f32 %v742, %v752
    %s754 = sld [smem:[#allocation3 + $0x3f]]
    %v755 = vstv %s754
    %v756 = vmul.f32 %v58, %v755
    %s757 = sld [smem:[#allocation6 + $0x3f]]
    %v758 = vstv %s757
    %v759 = vadd.f32 %v756, %v758
    %v760 = vtanh.pop %v759
    %s761 = sld [smem:[#allocation8 + $0x3f]]
    %v762 = vstv %s761
    %v763 = vmul.f32 %v760, %v762
    %v764 = vadd.f32 %v753, %v763
    %s765 = sld [smem:[#allocation3 + $0x40]]
    %v766 = vstv %s765
    %v767 = vmul.f32 %v58, %v766
    %s768 = sld [smem:[#allocation6 + $0x40]]
    %v769 = vstv %s768
    %v770 = vadd.f32 %v767, %v769
    %v771 = vtanh.pop %v770
    %s772 = sld [smem:[#allocation8 + $0x40]]
    %v773 = vstv %s772
    %v774 = vmul.f32 %v771, %v773
    %v775 = vadd.f32 %v764, %v774
    %s776 = sld [smem:[#allocation3 + $0x41]]
    %v777 = vstv %s776
    %v778 = vmul.f32 %v58, %v777
    %s779 = sld [smem:[#allocation6 + $0x41]]
    %v780 = vstv %s779
    %v781 = vadd.f32 %v778, %v780
    %v782 = vtanh.pop %v781
    %s783 = sld [smem:[#allocation8 + $0x41]]
    %v784 = vstv %s783
    %v785 = vmul.f32 %v782, %v784
    %v786 = vadd.f32 %v775, %v785
    %s787 = sld [smem:[#allocation3 + $0x42]]
    %v788 = vstv %s787
    %v789 = vmul.f32 %v58, %v788
    %s790 = sld [smem:[#allocation6 + $0x42]]
    %v791 = vstv %s790
    %v792 = vadd.f32 %v789, %v791
    %v793 = vtanh.pop %v792
    %s794 = sld [smem:[#allocation8 + $0x42]]
    %v795 = vstv %s794
    %v796 = vmul.f32 %v793, %v795
    %v797 = vadd.f32 %v786, %v796
    %s798 = sld [smem:[#allocation3 + $0x43]]
    %v799 = vstv %s798
    %v800 = vmul.f32 %v58, %v799
    %s801 = sld [smem:[#allocation6 + $0x43]]
    %v802 = vstv %s801
    %v803 = vadd.f32 %v800, %v802
    %v804 = vtanh.pop %v803
    %s805 = sld [smem:[#allocation8 + $0x43]]
    %v806 = vstv %s805
    %v807 = vmul.f32 %v804, %v806
    %v808 = vadd.f32 %v797, %v807
    %s809 = sld [smem:[#allocation3 + $0x44]]
    %v810 = vstv %s809
    %v811 = vmul.f32 %v58, %v810
    %s812 = sld [smem:[#allocation6 + $0x44]]
    %v813 = vstv %s812
    %v814 = vadd.f32 %v811, %v813
    %v815 = vtanh.pop %v814
    %s816 = sld [smem:[#allocation8 + $0x44]]
    %v817 = vstv %s816
    %v818 = vmul.f32 %v815, %v817
    %v819 = vadd.f32 %v808, %v818
    %s820 = sld [smem:[#allocation3 + $0x45]]
    %v821 = vstv %s820
    %v822 = vmul.f32 %v58, %v821
    %s823 = sld [smem:[#allocation6 + $0x45]]
    %v824 = vstv %s823
    %v825 = vadd.f32 %v822, %v824
    %v826 = vtanh.pop %v825
    %s827 = sld [smem:[#allocation8 + $0x45]]
    %v828 = vstv %s827
    %v829 = vmul.f32 %v826, %v828
    %v830 = vadd.f32 %v819, %v829
    %s831 = sld [smem:[#allocation3 + $0x46]]
    %v832 = vstv %s831
    %v833 = vmul.f32 %v58, %v832
    %s834 = sld [smem:[#allocation6 + $0x46]]
    %v835 = vstv %s834
    %v836 = vadd.f32 %v833, %v835
    %v837 = vtanh.pop %v836
    %s838 = sld [smem:[#allocation8 + $0x46]]
    %v839 = vstv %s838
    %v840 = vmul.f32 %v837, %v839
    %v841 = vadd.f32 %v830, %v840
    %s842 = sld [smem:[#allocation3 + $0x47]]
    %v843 = vstv %s842
    %v844 = vmul.f32 %v58, %v843
    %s845 = sld [smem:[#allocation6 + $0x47]]
    %v846 = vstv %s845
    %v847 = vadd.f32 %v844, %v846
    %v848 = vtanh.pop %v847
    %s849 = sld [smem:[#allocation8 + $0x47]]
    %v850 = vstv %s849
    %v851 = vmul.f32 %v848, %v850
    %v852 = vadd.f32 %v841, %v851
    %s853 = sld [smem:[#allocation3 + $0x48]]
    %v854 = vstv %s853
    %v855 = vmul.f32 %v58, %v854
    %s856 = sld [smem:[#allocation6 + $0x48]]
    %v857 = vstv %s856
    %v858 = vadd.f32 %v855, %v857
    %v859 = vtanh.pop %v858
    %s860 = sld [smem:[#allocation8 + $0x48]]
    %v861 = vstv %s860
    %v862 = vmul.f32 %v859, %v861
    %v863 = vadd.f32 %v852, %v862
    %s864 = sld [smem:[#allocation3 + $0x49]]
    %v865 = vstv %s864
    %v866 = vmul.f32 %v58, %v865
    %s867 = sld [smem:[#allocation6 + $0x49]]
    %v868 = vstv %s867
    %v869 = vadd.f32 %v866, %v868
    %v870 = vtanh.pop %v869
    %s871 = sld [smem:[#allocation8 + $0x49]]
    %v872 = vstv %s871
    %v873 = vmul.f32 %v870, %v872
    %v874 = vadd.f32 %v863, %v873
    %s875 = sld [smem:[#allocation3 + $0x4a]]
    %v876 = vstv %s875
    %v877 = vmul.f32 %v58, %v876
    %s878 = sld [smem:[#allocation6 + $0x4a]]
    %v879 = vstv %s878
    %v880 = vadd.f32 %v877, %v879
    %v881 = vtanh.pop %v880
    %s882 = sld [smem:[#allocation8 + $0x4a]]
    %v883 = vstv %s882
    %v884 = vmul.f32 %v881, %v883
    %v885 = vadd.f32 %v874, %v884
    %s886 = sld [smem:[#allocation3 + $0x4b]]
    %v887 = vstv %s886
    %v888 = vmul.f32 %v58, %v887
    %s889 = sld [smem:[#allocation6 + $0x4b]]
    %v890 = vstv %s889
    %v891 = vadd.f32 %v888, %v890
    %v892 = vtanh.pop %v891
    %s893 = sld [smem:[#allocation8 + $0x4b]]
    %v894 = vstv %s893
    %v895 = vmul.f32 %v892, %v894
    %v896 = vadd.f32 %v885, %v895
    %s897 = sld [smem:[#allocation3 + $0x4c]]
    %v898 = vstv %s897
    %v899 = vmul.f32 %v58, %v898
    %s900 = sld [smem:[#allocation6 + $0x4c]]
    %v901 = vstv %s900
    %v902 = vadd.f32 %v899, %v901
    %v903 = vtanh.pop %v902
    %s904 = sld [smem:[#allocation8 + $0x4c]]
    %v905 = vstv %s904
    %v906 = vmul.f32 %v903, %v905
    %v907 = vadd.f32 %v896, %v906
    %s908 = sld [smem:[#allocation3 + $0x4d]]
    %v909 = vstv %s908
    %v910 = vmul.f32 %v58, %v909
    %s911 = sld [smem:[#allocation6 + $0x4d]]
    %v912 = vstv %s911
    %v913 = vadd.f32 %v910, %v912
    %v914 = vtanh.pop %v913
    %s915 = sld [smem:[#allocation8 + $0x4d]]
    %v916 = vstv %s915
    %v917 = vmul.f32 %v914, %v916
    %v918 = vadd.f32 %v907, %v917
    %s919 = sld [smem:[#allocation3 + $0x4e]]
    %v920 = vstv %s919
    %v921 = vmul.f32 %v58, %v920
    %s922 = sld [smem:[#allocation6 + $0x4e]]
    %v923 = vstv %s922
    %v924 = vadd.f32 %v921, %v923
    %v925 = vtanh.pop %v924
    %s926 = sld [smem:[#allocation8 + $0x4e]]
    %v927 = vstv %s926
    %v928 = vmul.f32 %v925, %v927
    %v929 = vadd.f32 %v918, %v928
    %s930 = sld [smem:[#allocation3 + $0x4f]]
    %v931 = vstv %s930
    %v932 = vmul.f32 %v58, %v931
    %s933 = sld [smem:[#allocation6 + $0x4f]]
    %v934 = vstv %s933
    %v935 = vadd.f32 %v932, %v934
    %v936 = vtanh.pop %v935
    %s937 = sld [smem:[#allocation8 + $0x4f]]
    %v938 = vstv %s937
    %v939 = vmul.f32 %v936, %v938
    %v940 = vadd.f32 %v929, %v939
    %941 = vst [vmem:[#allocation9] sm:$0xff] %v940
    // Predicated region
    $region34: #{tpu_custom_call.1} parent=1 // pred_check
      _
    $region35: #{tpu_custom_call.1} parent=1 // pred_check_branch
      %943 = sbr.rel (0) target = $region37
    $region36: #{tpu_custom_call.1} parent=1 // pred_region
      %s945 = ssub.s32 128, 128
      %946 = vsyncadd [#allocation4], %s945
      %s948 = sshll.u32 [#allocation9], 4
      %s949 = int_to_ptr.vmem [resolvable:$true] %s948
      %951 = dma.vmem_to_hbm [thread:$0]  %s949, 128, %s5, [#allocation4]
    $region37: #{tpu_custom_call.1} parent=1 // pred_fallthru
      _
    // Predicated region
    $region38: #{tpu_custom_call.1} parent=1 // pred_check
      _
    $region39: #{tpu_custom_call.1} parent=1 // pred_check_branch
      %953 = sbr.rel (0) target = $region41
    $region40: #{tpu_custom_call.1} parent=1 // pred_region
      %954 = dma.done [#allocation4], 128
    $region41: #{tpu_custom_call.1} parent=1 // pred_fallthru
      _
    %955 = vsyncpa [#allocation4], 1
    %956 = vsyncpa [#allocation5], 1
    %957 = vsyncpa [#allocation7], 1

</llo_original>
